<compile_context>
chip_gen: v7x
topology: tpu7x:2x2x1
jax: 0.10.0
libtpu: 0.0.40
codegen_flags: <defaults>
</compile_context>

<pallas_src>
import jax
import jax.numpy as jnp
import numpy as np
from jax.experimental import pallas as pl
from jax.experimental.pallas import tpu as pltpu


def _round_up(x, m):
    return (x + m - 1) // m * m


def _vmem_budget_bytes():
    """~48 MiB on 64-MiB-VMEM parts (v7x), ~96 MiB on 128-MiB parts (v5e/v6e)."""
    cap = 128 * 1024 * 1024
    try:
        cap = int(getattr(pltpu.get_tpu_info(), "vmem_capacity_bytes", cap))
    except Exception:
        pass
    return min(cap * 3 // 4, 100 * 1024 * 1024)


def _pass1_vmem_bytes(s2, Hh, Wh, C_in, Mi, Cp, chunk_flat, itemsize):
    """Rough per-image VMEM footprint of pass 1 (with (8,128) tile padding)."""
    slab = s2 * Hh * _round_up(Wh, 8) * _round_up(C_in, 128) * itemsize
    wts = 9 * _round_up(C_in, 8) * Cp * itemsize
    ybuf = _round_up(Mi, 8) * Cp * itemsize
    acc = _round_up(chunk_flat, 8) * Cp * 4
    stats = 3 * 8 * Cp * 4
    return 2 * (slab + ybuf + stats) + 2 * wts + 2 * acc


def _pick_channel_tile(Mi, Cp, budget):
    """Largest lane-dense channel tile whose pass-2 blocks fit the VMEM budget."""
    for tc in (Cp, 512, 256, 128):
        if tc <= Cp and Cp % tc == 0:
            if 2 * Mi * tc * (2 + 4) <= budget // 2:   # bf16 in + f32 out, 2-buf
                return tc
    return 128


# ----------------------------- Pass 1 kernel --------------------------------
def _make_conv_stats_kernel(stride, Ho, Wo, C_in, Cp, chunk_rows):
    """Implicit-im2col conv (9 MXU taps per chunk) + shifted BN partial stats.

    Refs (one image per grid step):
      x_ref : (stride^2, Hh, Wh, C_in) bf16  phase-split padded input slab
      w_ref : (9, C_in, Cp)            bf16  resident weights (tap-major)
      y_ref : (1, Ho*Wo, Cp)           bf16  conv output (pre-BN)
      s1/s2/c0 : (1, 1, Cp)            f32   shifted partial sums / shift
    """

    def kernel(x_ref, w_ref, y_ref, s1_ref, s2_ref, c0_ref):
        c0 = None
        s1 = jnp.zeros((1, Cp), jnp.float32)
        s2 = jnp.zeros((1, Cp), jnp.float32)
        # Static (fully unrolled) loop over output-row chunks bounds the live
        # f32 accumulator size; all slice indices below are compile-time ints.
        for r0 in range(0, Ho, chunk_rows):
            rows = min(chunk_rows, Ho - r0)
            flat = rows * Wo
            acc = jnp.zeros((flat, Cp), jnp.float32)
            for kh in range(3):
                for kw in range(3):
                    ph = (kh % stride) * stride + (kw % stride)
                    rs = r0 + kh // stride
                    cs = kw // stride
                    lhs = x_ref[ph, rs:rs + rows, cs:cs + Wo, :]
                    lhs = lhs.reshape(flat, C_in)
                    acc = acc + jnp.dot(lhs, w_ref[kh * 3 + kw],
                                        preferred_element_type=jnp.float32)
            if c0 is None:                       # shift = first-chunk mean
                c0 = jnp.mean(acc, axis=0, keepdims=True)
            d = acc - c0
            s1 = s1 + jnp.sum(d, axis=0, keepdims=True)
            s2 = s2 + jnp.sum(d * d, axis=0, keepdims=True)
            y_ref[0, r0 * Wo:r0 * Wo + flat, :] = acc.astype(y_ref.dtype)
        s1_ref[...] = s1.reshape(1, 1, Cp)
        s2_ref[...] = s2.reshape(1, 1, Cp)
        c0_ref[...] = c0.reshape(1, 1, Cp)

    return kernel


# ----------------------------- Pass 2 kernel --------------------------------
def _bn_lrelu_kernel(y_ref, scale_ref, shift_ref, o_ref):
    z = y_ref[...].astype(jnp.float32) * scale_ref[...] + shift_ref[...]
    o_ref[...] = jnp.where(z >= 0, z, 0.2 * z)        # LeakyReLU(0.2)


# ------------------------------- Wrapper -------------------------------------
def block_forward(x_nchw, w_oihw, bias, gamma, beta, stride, *,
                  eps=1e-5, compute_dtype=jnp.bfloat16, nchw_output=True):
    N, C_in, H, W = x_nchw.shape
    C_out = w_oihw.shape[0]
    s = int(stride)
    s2 = s * s
    Ho = (H + 2 - 3) // s + 1
    Wo = (W + 2 - 3) // s + 1
    Mi = Ho * Wo
    Cp = _round_up(C_out, 128)

    # Per-channel conv bias is exactly cancelled by train-mode BN mean removal.
    del bias

    vmem_budget = _vmem_budget_bytes()

    # ---- NHWC, zero padding, and phase split (space-to-depth for stride>1) ----
    # Phase (p, q) holds xp[:, p::s, q::s, :]; kernel tap (kh, kw) then reads a
    # *stride-1* window of phase (kh % s, kw % s) at offset (kh//s, kw//s), so
    # every in-kernel slice is a cheap static, unit-stride window.
    x_nhwc = jnp.transpose(x_nchw, (0, 2, 3, 1)).astype(compute_dtype)
    xp = jnp.pad(x_nhwc, ((0, 0), (1, 1), (1, 1), (0, 0)))
    off = 2 // s
    Hh, Wh = Ho + off, Wo + off
    phases = []
    for p in range(s):
        for q in range(s):
            ph = xp[:, p::s, q::s, :][:, :Hh, :Wh, :]
            pad_h, pad_w = Hh - ph.shape[1], Wh - ph.shape[2]
            if pad_h or pad_w:
                ph = jnp.pad(ph, ((0, 0), (0, pad_h), (0, pad_w), (0, 0)))
            phases.append(ph)
    xps = jnp.stack(phases, axis=1).reshape(N * s2, Hh, Wh, C_in)

    # Weights (O, I, 3, 3) -> (9, I, Cp), kept fully VMEM-resident in pass 1.
    w9 = jnp.transpose(w_oihw, (2, 3, 1, 0)).reshape(9, C_in, C_out)
    w9 = jnp.pad(w9, ((0, 0), (0, 0), (0, Cp - C_out))).astype(compute_dtype)

    chunk_rows = max(1, min(Ho, 512 // max(Wo, 1)))   # ~512 flat rows / chunk
    itemsize = jnp.dtype(compute_dtype).itemsize

    est = _pass1_vmem_bytes(s2, Hh, Wh, C_in, Mi, Cp, chunk_rows * Wo, itemsize)
    assert est <= vmem_budget, (
        f"per-image blocks need ~{est} B of VMEM > budget {vmem_budget} B")

    cost1 = pl.CostEstimate(
        flops=2 * N * Mi * 9 * C_in * Cp,
        transcendentals=0,
        bytes_accessed=(N * s2 * Hh * Wh * C_in * itemsize    # input slabs
                        + 9 * C_in * Cp * itemsize            # weights, once
                        + N * Mi * Cp * itemsize              # bf16 y write
                        + 3 * N * Cp * 4))                    # stats

    # ---- Pass 1: implicit-im2col conv + per-image BN partial statistics ----
    kernel1 = _make_conv_stats_kernel(s, Ho, Wo, C_in, Cp, chunk_rows)
    y, s1, ssq, c0 = pl.pallas_call(
        kernel1,
        out_shape=(jax.ShapeDtypeStruct((N, Mi, Cp), compute_dtype),
                   jax.ShapeDtypeStruct((N, 1, Cp), jnp.float32),
                   jax.ShapeDtypeStruct((N, 1, Cp), jnp.float32),
                   jax.ShapeDtypeStruct((N, 1, Cp), jnp.float32)),
        grid_spec=pltpu.PrefetchScalarGridSpec(
            num_scalar_prefetch=0,
            grid=(N,),
            in_specs=[
                pl.BlockSpec((s2, Hh, Wh, C_in), lambda n: (n, 0, 0, 0)),
                pl.BlockSpec((9, C_in, Cp), lambda n: (0, 0, 0)),
            ],
            out_specs=[
                pl.BlockSpec((1, Mi, Cp), lambda n: (n, 0, 0)),
                pl.BlockSpec((1, 1, Cp), lambda n: (n, 0, 0)),
                pl.BlockSpec((1, 1, Cp), lambda n: (n, 0, 0)),
                pl.BlockSpec((1, 1, Cp), lambda n: (n, 0, 0)),
            ]),
        compiler_params=pltpu.CompilerParams(
            dimension_semantics=("parallel",),
            vmem_limit_bytes=vmem_budget),
        cost_estimate=cost1,
    )(xps, w9)

    # ---- BN statistics: combine shifted per-image partials (Chan's formula) ----
    inv_mi = 1.0 / float(Mi)
    mean_n = c0[:, 0, :] + s1[:, 0, :] * inv_mi           # (N, Cp) per-image mean
    m2_n = ssq[:, 0, :] - (s1[:, 0, :] ** 2) * inv_mi     # per-image sum (y-mean_n)^2
    mean = jnp.mean(mean_n, axis=0)                       # (Cp,)
    m2 = jnp.sum(m2_n, axis=0) + float(Mi) * jnp.sum((mean_n - mean) ** 2, axis=0)
    var = jnp.maximum(m2 / float(N * Mi), 0.0)
    inv_std = jax.lax.rsqrt(var + eps)
    gamma_p = jnp.pad(gamma.astype(jnp.float32), (0, Cp - C_out))
    beta_p = jnp.pad(beta.astype(jnp.float32), (0, Cp - C_out))
    scale = (gamma_p * inv_std).reshape(1, 1, Cp)
    shift = (beta_p - mean * gamma_p * inv_std).reshape(1, 1, Cp)

    # ---- Pass 2: y * scale + shift, LeakyReLU(0.2); lane-dense channel tiles ----
    TC = _pick_channel_tile(Mi, Cp, vmem_budget)
    out3 = pl.pallas_call(
        _bn_lrelu_kernel,
        out_shape=jax.ShapeDtypeStruct((N, Mi, Cp), jnp.float32),
        grid_spec=pltpu.PrefetchScalarGridSpec(
            num_scalar_prefetch=0,
            grid=(N, Cp // TC),
            in_specs=[
                pl.BlockSpec((1, Mi, TC), lambda n, c: (n, 0, c)),
                pl.BlockSpec((1, 1, TC), lambda n, c: (0, 0, c)),
                pl.BlockSpec((1, 1, TC), lambda n, c: (0, 0, c)),
            ],
            out_specs=pl.BlockSpec((1, Mi, TC), lambda n, c: (n, 0, c))),
        compiler_params=pltpu.CompilerParams(
            dimension_semantics=("parallel", "parallel"),
            vmem_limit_bytes=vmem_budget),
    )(y, scale, shift)

    out = out3[:, :, :C_out].reshape(N, Ho, Wo, C_out)
    if not nchw_output:
        return out            # NHWC: preferred when chaining SRGAN Blocks
    # TODO(synk): this NCHW transpose is an extra HBM pass kept only to honor
    #   the nn.Module contract; chain Blocks in NHWC and drop it when possible.
    return jnp.transpose(out, (0, 3, 1, 2))


# ------------------------------ Reference ------------------------------------
def block_reference(x, w, b, gamma, beta, stride, *, eps=1e-5):
    """Pure-JAX reference (conv + train-mode BN + LeakyReLU(0.2))."""
    y = jax.lax.conv_general_dilated(
        x, w, window_strides=(stride, stride), padding=((1, 1), (1, 1)),
        dimension_numbers=('NCHW', 'OIHW', 'NCHW'))
    y = y + b[None, :, None, None]
    mean = jnp.mean(y, axis=(0, 2, 3), keepdims=True)
    var = jnp.mean((y - mean) ** 2, axis=(0, 2, 3), keepdims=True)
    y = (y - mean) * jax.lax.rsqrt(var + eps)
    y = y * gamma[None, :, None, None] + beta[None, :, None, None]
    return jnp.where(y >= 0, y, 0.2 * y)


if __name__ == "__main__":
    key = jax.random.PRNGKey(0)
    k_x, k_w, k_b, k_g, k_be = jax.random.split(key, 5)

    N, C_in, H, W = 2, 4, 16, 16
    C_out = 8

    x = jax.random.normal(k_x, (N, C_in, H, W), dtype=jnp.float32)
    w = jax.random.normal(k_w, (C_out, C_in, 3, 3), dtype=jnp.float32) * 0.1
    b = jax.random.normal(k_b, (C_out,), dtype=jnp.float32) * 0.1
    gamma = 1.0 + 0.1 * jax.random.normal(k_g, (C_out,), dtype=jnp.float32)
    beta = 0.1 * jax.random.normal(k_be, (C_out,), dtype=jnp.float32)

    fwd = jax.jit(block_forward, static_argnums=(5,))

    # Reference with bf16-rounded conv operands (matches the kernel's MXU
    # numerics: bf16 multiplies, f32 accumulation).  The bias is kept in the
    # reference to demonstrate its exact cancellation by train-mode BN.  The
    # kernel additionally stores the conv output in bf16, so tolerances are
    # ~1e-2 instead of 1e-3.
    xq = x.astype(jnp.bfloat16).astype(jnp.float32)
    wq = w.astype(jnp.bfloat16).astype(jnp.float32)

    for stride in (2, 1):
        out = jax.block_until_ready(fwd(x, w, b, gamma, beta, stride))
        ref = jax.block_until_ready(block_reference(xq, wq, b, gamma, beta, stride))
        assert out.shape == ref.shape, (stride, out.shape, ref.shape)
        np.testing.assert_allclose(np.asarray(out), np.asarray(ref),
                                   atol=1e-2, rtol=1e-2)

    print("KERNEL_OK")
</pallas_src>

<mosaic_0001>
module attributes {stable_mosaic.version = 11 : i64} {
  func.func @_bn_lrelu_kernel(%arg0: i32, %arg1: i32, %arg2: memref<1x64x128xbf16, #tpu.memory_space<vmem>>, %arg3: memref<1x1x128xf32, #tpu.memory_space<vmem>>, %arg4: memref<1x1x128xf32, #tpu.memory_space<vmem>>, %arg5: memref<1x64x128xf32, #tpu.memory_space<vmem>>) attributes {dimension_semantics = [#tpu.dimension_semantics<parallel>, #tpu.dimension_semantics<parallel>], iteration_bounds = array<i64: 2, 1>, scalar_prefetch = 0 : i64, scratch_operands = 0 : i64, tpu.core_type = #tpu.core_type<tc>, window_params = [{transform_indices = @transform_0, window_bounds = array<i64: 1, 64, 128>}, {transform_indices = @transform_1, window_bounds = array<i64: 1, 1, 128>}, {transform_indices = @transform_2, window_bounds = array<i64: 1, 1, 128>}, {transform_indices = @transform_3, window_bounds = array<i64: 1, 64, 128>}]} {
    %c0 = arith.constant 0 : index
    %c0_0 = arith.constant 0 : index
    %c0_1 = arith.constant 0 : index
    %0 = vector.load %arg2[%c0, %c0_0, %c0_1] : memref<1x64x128xbf16, #tpu.memory_space<vmem>>, vector<1x64x128xbf16>
    %1 = arith.extf %0 : vector<1x64x128xbf16> to vector<1x64x128xf32>
    %c0_2 = arith.constant 0 : index
    %c0_3 = arith.constant 0 : index
    %c0_4 = arith.constant 0 : index
    %2 = vector.load %arg3[%c0_2, %c0_3, %c0_4] : memref<1x1x128xf32, #tpu.memory_space<vmem>>, vector<1x1x128xf32>
    %3 = vector.broadcast %2 : vector<1x1x128xf32> to vector<1x64x128xf32>
    %4 = arith.mulf %1, %3 : vector<1x64x128xf32>
    %c0_5 = arith.constant 0 : index
    %c0_6 = arith.constant 0 : index
    %c0_7 = arith.constant 0 : index
    %5 = vector.load %arg4[%c0_5, %c0_6, %c0_7] : memref<1x1x128xf32, #tpu.memory_space<vmem>>, vector<1x1x128xf32>
    %6 = vector.broadcast %5 : vector<1x1x128xf32> to vector<1x64x128xf32>
    %7 = arith.addf %4, %6 : vector<1x64x128xf32>
    %cst = arith.constant 0.000000e+00 : f32
    %8 = vector.broadcast %cst : f32 to vector<1x64x128xf32>
    %9 = arith.cmpf oge, %7, %8 : vector<1x64x128xf32>
    %cst_8 = arith.constant 2.000000e-01 : f32
    %10 = vector.broadcast %cst_8 : f32 to vector<1x64x128xf32>
    %11 = arith.mulf %10, %7 : vector<1x64x128xf32>
    %12 = arith.select %9, %7, %11 : vector<1x64x128xi1>, vector<1x64x128xf32>
    %c0_9 = arith.constant 0 : index
    %c0_10 = arith.constant 0 : index
    %c0_11 = arith.constant 0 : index
    %13 = vector.load %arg5[%c0_9, %c0_10, %c0_11] : memref<1x64x128xf32, #tpu.memory_space<vmem>>, vector<1x64x128xf32>
    tpu.vector_store %arg5[%c0_9, %c0_10, %c0_11], %12 {strides = array<i32>} : memref<1x64x128xf32, #tpu.memory_space<vmem>>, vector<1x64x128xf32>,
    return
  }
  func.func @transform_0(%arg0: i32, %arg1: i32) -> (i32, i32, i32) {
    %c0_i32 = arith.constant 0 : i32
    %c0_i32_0 = arith.constant 0 : i32
    return %arg0, %c0_i32, %arg1 : i32, i32, i32
  }
  func.func @transform_1(%arg0: i32, %arg1: i32) -> (i32, i32, i32) {
    %c0_i32 = arith.constant 0 : i32
    %c0_i32_0 = arith.constant 0 : i32
    %c0_i32_1 = arith.constant 0 : i32
    return %c0_i32, %c0_i32_0, %arg1 : i32, i32, i32
  }
  func.func @transform_2(%arg0: i32, %arg1: i32) -> (i32, i32, i32) {
    %c0_i32 = arith.constant 0 : i32
    %c0_i32_0 = arith.constant 0 : i32
    %c0_i32_1 = arith.constant 0 : i32
    return %c0_i32, %c0_i32_0, %arg1 : i32, i32, i32
  }
  func.func @transform_3(%arg0: i32, %arg1: i32) -> (i32, i32, i32) {
    %c0_i32 = arith.constant 0 : i32
    %c0_i32_0 = arith.constant 0 : i32
    return %arg0, %c0_i32, %arg1 : i32, i32, i32
  }
}

module attributes {stable_mosaic.version = 11 : i64} {
  func.func @kernel(%arg0: i32, %arg1: memref<4x9x9x4xbf16, #tpu.memory_space<vmem>>, %arg2: memref<9x4x128xbf16, #tpu.memory_space<vmem>>, %arg3: memref<1x64x128xbf16, #tpu.memory_space<vmem>>, %arg4: memref<1x1x128xf32, #tpu.memory_space<vmem>>, %arg5: memref<1x1x128xf32, #tpu.memory_space<vmem>>, %arg6: memref<1x1x128xf32, #tpu.memory_space<vmem>>) attributes {dimension_semantics = [#tpu.dimension_semantics<parallel>], iteration_bounds = array<i64: 2>, scalar_prefetch = 0 : i64, scratch_operands = 0 : i64, tpu.core_type = #tpu.core_type<tc>, window_params = [{transform_indices = @transform_0, window_bounds = array<i64: 4, 9, 9, 4>}, {pipeline_mode = #tpu.pipeline_mode<synchronous>, transform_indices = @transform_1, window_bounds = array<i64: 9, 4, 128>}, {transform_indices = @transform_2, window_bounds = array<i64: 1, 64, 128>}, {transform_indices = @transform_3, window_bounds = array<i64: 1, 1, 128>}, {transform_indices = @transform_4, window_bounds = array<i64: 1, 1, 128>}, {transform_indices = @transform_5, window_bounds = array<i64: 1, 1, 128>}]} {
    %cst = arith.constant 0.000000e+00 : f32
    %0 = vector.broadcast %cst : f32 to vector<1x128xf32>
    %cst_0 = arith.constant 0.000000e+00 : f32
    %1 = vector.broadcast %cst_0 : f32 to vector<1x128xf32>
    %cst_1 = arith.constant 0.000000e+00 : f32
    %2 = vector.broadcast %cst_1 : f32 to vector<64x128xf32>
    %c0 = arith.constant 0 : index
    %c0_2 = arith.constant 0 : index
    %c0_3 = arith.constant 0 : index
    %c0_4 = arith.constant 0 : index
    %3 = vector.load %arg1[%c0, %c0_2, %c0_3, %c0_4] : memref<4x9x9x4xbf16, #tpu.memory_space<vmem>>, vector<1x8x8x4xbf16>
    %4 = vector.shape_cast %3 : vector<1x8x8x4xbf16> to vector<8x8x4xbf16>
    %5 = vector.shape_cast %4 : vector<8x8x4xbf16> to vector<64x4xbf16>
    %c0_5 = arith.constant 0 : index
    %c0_6 = arith.constant 0 : index
    %c0_7 = arith.constant 0 : index
    %6 = vector.load %arg2[%c0_5, %c0_6, %c0_7] : memref<9x4x128xbf16, #tpu.memory_space<vmem>>, vector<1x4x128xbf16>
    %7 = vector.shape_cast %6 : vector<1x4x128xbf16> to vector<4x128xbf16>
    %cst_8 = arith.constant dense<0.000000e+00> : vector<64x128xf32>
    %8 = tpu.matmul %5, %7, %cst_8 {dimension_numbers = #tpu.dot_dimension_numbers<[1], [0], [0], [1], [0, 0, 1, 1], [], []>} : vector<64x4xbf16>, vector<4x128xbf16>, vector<64x128xf32> -> vector<64x128xf32>
    %9 = arith.addf %2, %8 : vector<64x128xf32>
    %c1 = arith.constant 1 : index
    %c0_9 = arith.constant 0 : index
    %c0_10 = arith.constant 0 : index
    %c0_11 = arith.constant 0 : index
    %10 = vector.load %arg1[%c1, %c0_9, %c0_10, %c0_11] : memref<4x9x9x4xbf16, #tpu.memory_space<vmem>>, vector<1x8x8x4xbf16>
    %11 = vector.shape_cast %10 : vector<1x8x8x4xbf16> to vector<8x8x4xbf16>
    %12 = vector.shape_cast %11 : vector<8x8x4xbf16> to vector<64x4xbf16>
    %c1_12 = arith.constant 1 : index
    %c0_13 = arith.constant 0 : index
    %c0_14 = arith.constant 0 : index
    %13 = vector.load %arg2[%c1_12, %c0_13, %c0_14] : memref<9x4x128xbf16, #tpu.memory_space<vmem>>, vector<1x4x128xbf16>
    %14 = vector.shape_cast %13 : vector<1x4x128xbf16> to vector<4x128xbf16>
    %cst_15 = arith.constant dense<0.000000e+00> : vector<64x128xf32>
    %15 = tpu.matmul %12, %14, %cst_15 {dimension_numbers = #tpu.dot_dimension_numbers<[1], [0], [0], [1], [0, 0, 1, 1], [], []>} : vector<64x4xbf16>, vector<4x128xbf16>, vector<64x128xf32> -> vector<64x128xf32>
    %16 = arith.addf %9, %15 : vector<64x128xf32>
    %c0_16 = arith.constant 0 : index
    %c0_17 = arith.constant 0 : index
    %c1_18 = arith.constant 1 : index
    %c0_19 = arith.constant 0 : index
    %17 = vector.load %arg1[%c0_16, %c0_17, %c1_18, %c0_19] : memref<4x9x9x4xbf16, #tpu.memory_space<vmem>>, vector<1x8x8x4xbf16>
    %18 = vector.shape_cast %17 : vector<1x8x8x4xbf16> to vector<8x8x4xbf16>
    %19 = vector.shape_cast %18 : vector<8x8x4xbf16> to vector<64x4xbf16>
    %c2 = arith.constant 2 : index
    %c0_20 = arith.constant 0 : index
    %c0_21 = arith.constant 0 : index
    %20 = vector.load %arg2[%c2, %c0_20, %c0_21] : memref<9x4x128xbf16, #tpu.memory_space<vmem>>, vector<1x4x128xbf16>
    %21 = vector.shape_cast %20 : vector<1x4x128xbf16> to vector<4x128xbf16>
    %cst_22 = arith.constant dense<0.000000e+00> : vector<64x128xf32>
    %22 = tpu.matmul %19, %21, %cst_22 {dimension_numbers = #tpu.dot_dimension_numbers<[1], [0], [0], [1], [0, 0, 1, 1], [], []>} : vector<64x4xbf16>, vector<4x128xbf16>, vector<64x128xf32> -> vector<64x128xf32>
    %23 = arith.addf %16, %22 : vector<64x128xf32>
    %c2_23 = arith.constant 2 : index
    %c0_24 = arith.constant 0 : index
    %c0_25 = arith.constant 0 : index
    %c0_26 = arith.constant 0 : index
    %24 = vector.load %arg1[%c2_23, %c0_24, %c0_25, %c0_26] : memref<4x9x9x4xbf16, #tpu.memory_space<vmem>>, vector<1x8x8x4xbf16>
    %25 = vector.shape_cast %24 : vector<1x8x8x4xbf16> to vector<8x8x4xbf16>
    %26 = vector.shape_cast %25 : vector<8x8x4xbf16> to vector<64x4xbf16>
    %c3 = arith.constant 3 : index
    %c0_27 = arith.constant 0 : index
    %c0_28 = arith.constant 0 : index
    %27 = vector.load %arg2[%c3, %c0_27, %c0_28] : memref<9x4x128xbf16, #tpu.memory_space<vmem>>, vector<1x4x128xbf16>
    %28 = vector.shape_cast %27 : vector<1x4x128xbf16> to vector<4x128xbf16>
    %cst_29 = arith.constant dense<0.000000e+00> : vector<64x128xf32>
    %29 = tpu.matmul %26, %28, %cst_29 {dimension_numbers = #tpu.dot_dimension_numbers<[1], [0], [0], [1], [0, 0, 1, 1], [], []>} : vector<64x4xbf16>, vector<4x128xbf16>, vector<64x128xf32> -> vector<64x128xf32>
    %30 = arith.addf %23, %29 : vector<64x128xf32>
    %c3_30 = arith.constant 3 : index
    %c0_31 = arith.constant 0 : index
    %c0_32 = arith.constant 0 : index
    %c0_33 = arith.constant 0 : index
    %31 = vector.load %arg1[%c3_30, %c0_31, %c0_32, %c0_33] : memref<4x9x9x4xbf16, #tpu.memory_space<vmem>>, vector<1x8x8x4xbf16>
    %32 = vector.shape_cast %31 : vector<1x8x8x4xbf16> to vector<8x8x4xbf16>
    %33 = vector.shape_cast %32 : vector<8x8x4xbf16> to vector<64x4xbf16>
    %c4 = arith.constant 4 : index
    %c0_34 = arith.constant 0 : index
    %c0_35 = arith.constant 0 : index
    %34 = vector.load %arg2[%c4, %c0_34, %c0_35] : memref<9x4x128xbf16, #tpu.memory_space<vmem>>, vector<1x4x128xbf16>
    %35 = vector.shape_cast %34 : vector<1x4x128xbf16> to vector<4x128xbf16>
    %cst_36 = arith.constant dense<0.000000e+00> : vector<64x128xf32>
    %36 = tpu.matmul %33, %35, %cst_36 {dimension_numbers = #tpu.dot_dimension_numbers<[1], [0], [0], [1], [0, 0, 1, 1], [], []>} : vector<64x4xbf16>, vector<4x128xbf16>, vector<64x128xf32> -> vector<64x128xf32>
    %37 = arith.addf %30, %36 : vector<64x128xf32>
    %c2_37 = arith.constant 2 : index
    %c0_38 = arith.constant 0 : index
    %c1_39 = arith.constant 1 : index
    %c0_40 = arith.constant 0 : index
    %38 = vector.load %arg1[%c2_37, %c0_38, %c1_39, %c0_40] : memref<4x9x9x4xbf16, #tpu.memory_space<vmem>>, vector<1x8x8x4xbf16>
    %39 = vector.shape_cast %38 : vector<1x8x8x4xbf16> to vector<8x8x4xbf16>
    %40 = vector.shape_cast %39 : vector<8x8x4xbf16> to vector<64x4xbf16>
    %c5 = arith.constant 5 : index
    %c0_41 = arith.constant 0 : index
    %c0_42 = arith.constant 0 : index
    %41 = vector.load %arg2[%c5, %c0_41, %c0_42] : memref<9x4x128xbf16, #tpu.memory_space<vmem>>, vector<1x4x128xbf16>
    %42 = vector.shape_cast %41 : vector<1x4x128xbf16> to vector<4x128xbf16>
    %cst_43 = arith.constant dense<0.000000e+00> : vector<64x128xf32>
    %43 = tpu.matmul %40, %42, %cst_43 {dimension_numbers = #tpu.dot_dimension_numbers<[1], [0], [0], [1], [0, 0, 1, 1], [], []>} : vector<64x4xbf16>, vector<4x128xbf16>, vector<64x128xf32> -> vector<64x128xf32>
    %44 = arith.addf %37, %43 : vector<64x128xf32>
    %c0_44 = arith.constant 0 : index
    %c1_45 = arith.constant 1 : index
    %c0_46 = arith.constant 0 : index
    %c0_47 = arith.constant 0 : index
    %45 = vector.load %arg1[%c0_44, %c1_45, %c0_46, %c0_47] : memref<4x9x9x4xbf16, #tpu.memory_space<vmem>>, vector<1x8x8x4xbf16>
    %46 = vector.shape_cast %45 : vector<1x8x8x4xbf16> to vector<8x8x4xbf16>
    %47 = vector.shape_cast %46 : vector<8x8x4xbf16> to vector<64x4xbf16>
    %c6 = arith.constant 6 : index
    %c0_48 = arith.constant 0 : index
    %c0_49 = arith.constant 0 : index
    %48 = vector.load %arg2[%c6, %c0_48, %c0_49] : memref<9x4x128xbf16, #tpu.memory_space<vmem>>, vector<1x4x128xbf16>
    %49 = vector.shape_cast %48 : vector<1x4x128xbf16> to vector<4x128xbf16>
    %cst_50 = arith.constant dense<0.000000e+00> : vector<64x128xf32>
    %50 = tpu.matmul %47, %49, %cst_50 {dimension_numbers = #tpu.dot_dimension_numbers<[1], [0], [0], [1], [0, 0, 1, 1], [], []>} : vector<64x4xbf16>, vector<4x128xbf16>, vector<64x128xf32> -> vector<64x128xf32>
    %51 = arith.addf %44, %50 : vector<64x128xf32>
    %c1_51 = arith.constant 1 : index
    %c1_52 = arith.constant 1 : index
    %c0_53 = arith.constant 0 : index
    %c0_54 = arith.constant 0 : index
    %52 = vector.load %arg1[%c1_51, %c1_52, %c0_53, %c0_54] : memref<4x9x9x4xbf16, #tpu.memory_space<vmem>>, vector<1x8x8x4xbf16>
    %53 = vector.shape_cast %52 : vector<1x8x8x4xbf16> to vector<8x8x4xbf16>
    %54 = vector.shape_cast %53 : vector<8x8x4xbf16> to vector<64x4xbf16>
    %c7 = arith.constant 7 : index
    %c0_55 = arith.constant 0 : index
    %c0_56 = arith.constant 0 : index
    %55 = vector.load %arg2[%c7, %c0_55, %c0_56] : memref<9x4x128xbf16, #tpu.memory_space<vmem>>, vector<1x4x128xbf16>
    %56 = vector.shape_cast %55 : vector<1x4x128xbf16> to vector<4x128xbf16>
    %cst_57 = arith.constant dense<0.000000e+00> : vector<64x128xf32>
    %57 = tpu.matmul %54, %56, %cst_57 {dimension_numbers = #tpu.dot_dimension_numbers<[1], [0], [0], [1], [0, 0, 1, 1], [], []>} : vector<64x4xbf16>, vector<4x128xbf16>, vector<64x128xf32> -> vector<64x128xf32>
    %58 = arith.addf %51, %57 : vector<64x128xf32>
    %c0_58 = arith.constant 0 : index
    %c1_59 = arith.constant 1 : index
    %c1_60 = arith.constant 1 : index
    %c0_61 = arith.constant 0 : index
    %59 = vector.load %arg1[%c0_58, %c1_59, %c1_60, %c0_61] : memref<4x9x9x4xbf16, #tpu.memory_space<vmem>>, vector<1x8x8x4xbf16>
    %60 = vector.shape_cast %59 : vector<1x8x8x4xbf16> to vector<8x8x4xbf16>
    %61 = vector.shape_cast %60 : vector<8x8x4xbf16> to vector<64x4xbf16>
    %c8 = arith.constant 8 : index
    %c0_62 = arith.constant 0 : index
    %c0_63 = arith.constant 0 : index
    %62 = vector.load %arg2[%c8, %c0_62, %c0_63] : memref<9x4x128xbf16, #tpu.memory_space<vmem>>, vector<1x4x128xbf16>
    %63 = vector.shape_cast %62 : vector<1x4x128xbf16> to vector<4x128xbf16>
    %cst_64 = arith.constant dense<0.000000e+00> : vector<64x128xf32>
    %64 = tpu.matmul %61, %63, %cst_64 {dimension_numbers = #tpu.dot_dimension_numbers<[1], [0], [0], [1], [0, 0, 1, 1], [], []>} : vector<64x4xbf16>, vector<4x128xbf16>, vector<64x128xf32> -> vector<64x128xf32>
    %65 = arith.addf %58, %64 : vector<64x128xf32>
    %cst_65 = arith.constant dense<0.000000e+00> : vector<128xf32>
    %66 = vector.multi_reduction <add>, %65, %cst_65 [0] : vector<64x128xf32> to vector<128xf32>
    %67 = vector.shape_cast %66 : vector<128xf32> to vector<1x128xf32>
    %cst_66 = arith.constant 6.400000e+01 : f32
    %68 = vector.broadcast %cst_66 : f32 to vector<1x128xf32>
    %69 = arith.divf %67, %68 : vector<1x128xf32>
    %70 = vector.broadcast %69 : vector<1x128xf32> to vector<64x128xf32>
    %71 = arith.subf %65, %70 : vector<64x128xf32>
    %cst_67 = arith.constant dense<0.000000e+00> : vector<128xf32>
    %72 = vector.multi_reduction <add>, %71, %cst_67 [0] : vector<64x128xf32> to vector<128xf32>
    %73 = vector.shape_cast %72 : vector<128xf32> to vector<1x128xf32>
    %74 = arith.addf %0, %73 : vector<1x128xf32>
    %75 = arith.mulf %71, %71 : vector<64x128xf32>
    %cst_68 = arith.constant dense<0.000000e+00> : vector<128xf32>
    %76 = vector.multi_reduction <add>, %75, %cst_68 [0] : vector<64x128xf32> to vector<128xf32>
    %77 = vector.shape_cast %76 : vector<128xf32> to vector<1x128xf32>
    %78 = arith.addf %1, %77 : vector<1x128xf32>
    %79 = arith.truncf %65 : vector<64x128xf32> to vector<64x128xbf16>
    %c0_69 = arith.constant 0 : index
    %c0_70 = arith.constant 0 : index
    %c0_71 = arith.constant 0 : index
    %80 = vector.load %arg3[%c0_69, %c0_70, %c0_71] : memref<1x64x128xbf16, #tpu.memory_space<vmem>>, vector<1x64x128xbf16>
    %81 = vector.shape_cast %80 : vector<1x64x128xbf16> to vector<64x128xbf16>
    %82 = vector.shape_cast %79 : vector<64x128xbf16> to vector<1x64x128xbf16>
    tpu.vector_store %arg3[%c0_69, %c0_70, %c0_71], %82 {strides = array<i32>} : memref<1x64x128xbf16, #tpu.memory_space<vmem>>, vector<1x64x128xbf16>,
    %83 = vector.shape_cast %74 : vector<1x128xf32> to vector<1x1x128xf32>
    %c0_72 = arith.constant 0 : index
    %c0_73 = arith.constant 0 : index
    %c0_74 = arith.constant 0 : index
    %84 = vector.load %arg4[%c0_72, %c0_73, %c0_74] : memref<1x1x128xf32, #tpu.memory_space<vmem>>, vector<1x1x128xf32>
    tpu.vector_store %arg4[%c0_72, %c0_73, %c0_74], %83 {strides = array<i32>} : memref<1x1x128xf32, #tpu.memory_space<vmem>>, vector<1x1x128xf32>,
    %85 = vector.shape_cast %78 : vector<1x128xf32> to vector<1x1x128xf32>
    %c0_75 = arith.constant 0 : index
    %c0_76 = arith.constant 0 : index
    %c0_77 = arith.constant 0 : index
    %86 = vector.load %arg5[%c0_75, %c0_76, %c0_77] : memref<1x1x128xf32, #tpu.memory_space<vmem>>, vector<1x1x128xf32>
    tpu.vector_store %arg5[%c0_75, %c0_76, %c0_77], %85 {strides = array<i32>} : memref<1x1x128xf32, #tpu.memory_space<vmem>>, vector<1x1x128xf32>,
    %87 = vector.shape_cast %69 : vector<1x128xf32> to vector<1x1x128xf32>
    %c0_78 = arith.constant 0 : index
    %c0_79 = arith.constant 0 : index
    %c0_80 = arith.constant 0 : index
    %88 = vector.load %arg6[%c0_78, %c0_79, %c0_80] : memref<1x1x128xf32, #tpu.memory_space<vmem>>, vector<1x1x128xf32>
    tpu.vector_store %arg6[%c0_78, %c0_79, %c0_80], %87 {strides = array<i32>} : memref<1x1x128xf32, #tpu.memory_space<vmem>>, vector<1x1x128xf32>,
    return
  }
  func.func @transform_0(%arg0: i32) -> (i32, i32, i32, i32) {
    %c0_i32 = arith.constant 0 : i32
    %c0_i32_0 = arith.constant 0 : i32
    %c0_i32_1 = arith.constant 0 : i32
    %c0_i32_2 = arith.constant 0 : i32
    return %arg0, %c0_i32, %c0_i32_0, %c0_i32_1 : i32, i32, i32, i32
  }
  func.func @transform_1(%arg0: i32) -> (i32, i32, i32) {
    %c0_i32 = arith.constant 0 : i32
    %c0_i32_0 = arith.constant 0 : i32
    %c0_i32_1 = arith.constant 0 : i32
    %c0_i32_2 = arith.constant 0 : i32
    return %c0_i32, %c0_i32_0, %c0_i32_1 : i32, i32, i32
  }
  func.func @transform_2(%arg0: i32) -> (i32, i32, i32) {
    %c0_i32 = arith.constant 0 : i32
    %c0_i32_0 = arith.constant 0 : i32
    %c0_i32_1 = arith.constant 0 : i32
    return %arg0, %c0_i32, %c0_i32_0 : i32, i32, i32
  }
  func.func @transform_3(%arg0: i32) -> (i32, i32, i32) {
    %c0_i32 = arith.constant 0 : i32
    %c0_i32_0 = arith.constant 0 : i32
    %c0_i32_1 = arith.constant 0 : i32
    return %arg0, %c0_i32, %c0_i32_0 : i32, i32, i32
  }
  func.func @transform_4(%arg0: i32) -> (i32, i32, i32) {
    %c0_i32 = arith.constant 0 : i32
    %c0_i32_0 = arith.constant 0 : i32
    %c0_i32_1 = arith.constant 0 : i32
    return %arg0, %c0_i32, %c0_i32_0 : i32, i32, i32
  }
  func.func @transform_5(%arg0: i32) -> (i32, i32, i32) {
    %c0_i32 = arith.constant 0 : i32
    %c0_i32_0 = arith.constant 0 : i32
    %c0_i32_1 = arith.constant 0 : i32
    return %arg0, %c0_i32, %c0_i32_0 : i32, i32, i32
  }
}

</mosaic_0001>

<llo_original>
// kernel: block_forward.3
$region0: #{block_forward.3}
  #allocation0 [shape = 'u32[]', space=smem, size = 0x4, offset = 0x4, fixed_abs, tag = 'smem constant byte address 0x4 - core index']
  #allocation1 [shape = 'u32[144,128]{1,0:T(1,128)}', space=vmem, size = 0x12000, scoped, tag = 'internal scratch']
  %s0 = inlined_call_operand.hbm [shape: bf16[2,64,128], index: 0, kind: input, shape index: {}]
  %s1 = inlined_call_operand.hbm [shape: f32[1,1,128], index: 1, kind: input, shape index: {}]
  %s2 = inlined_call_operand.hbm [shape: f32[1,1,128], index: 2, kind: input, shape index: {}]
  %s3 = inlined_call_operand.hbm [shape: f32[2,64,128], index: 3, kind: output, shape index: {}]
  %s4 = sld [smem:[#allocation0]]
  $region57: #{block_forward.3} parent=0
    _
  %s6 = ssub.s32 1, %s4
  %s7 = scalar_select 0, %s6, %s4
  $region1: #{block_forward.3} parent=0
    #allocation2 [shape = 'u8[32768]{0}', space=vmem, size = 0x8000, scoped, tag = 'input window, operand 0']
    #allocation3 [shape = 's32[2]{0}', space=sflag, size = 0x8, scoped, tag = 'scoped memory for block_forward.3']
    #allocation4 [shape = 's32[2]{0}', space=sflag, size = 0x8, scoped, tag = 'scoped memory for block_forward.3']
    #allocation5 [shape = 'u8[512]{0}', space=vmem, size = 0x400, scoped, tag = 'input window, operand 1, single buffered']
    #allocation6 [shape = 's32[1]{0}', space=sflag, size = 0x4, scoped, tag = 'scoped memory for block_forward.3']
    #allocation7 [shape = 'u8[512]{0}', space=vmem, size = 0x400, scoped, tag = 'input window, operand 2, single buffered']
    #allocation8 [shape = 'u8[65536]{0}', space=vmem, size = 0x10000, scoped, tag = 'output window, operand 0']
    %8 = vsyncpa [#allocation3], 0
    %s9 = scalar_lea.sflag [#allocation3], 1
    %10 = vsyncpa %s9, 0
    %11 = vsyncpa [#allocation6], 0
    %12 = vsyncpa [#allocation4], 0
    %s13 = scalar_lea.sflag [#allocation4], 1
    %14 = vsyncpa %s13, 0
    loop: start=0, step=1, limit=4
    $region2: #{block_forward.3} parent=1 // loop_pre_header
      _
    $region3: #{block_forward.3} parent=1 // loop_header
      %s16 = sphi 0, %s20
      %p17 = scmp.ge.s32.totalorder %s16, 4
      %s23 = sphi 0, %s35
      %s24 = sphi 0, %s31
      %s25 = sphi 0, %s23
      %s26 = sphi 0, %s24
      %s27 = sphi 0, %s25
      %s28 = sphi 0, %s26
      %s40 = sphi 0, %s42
      %s43 = sphi 0, %s40
      %s44 = sphi 0, %s43
      %s60 = sphi 0, %s44
      %s66 = sphi 0, %s68
      %s69 = sphi 0, %s66
      %s70 = sphi 0, %s69
      %s86 = sphi 0, %s70
      %s92 = sphi 0, %s94
      %s95 = sphi 0, %s92
      %s96 = sphi 0, %s95
      %s112 = sphi 0, %s96
      %s120 = sphi 0, %s122
      %s123 = sphi 0, %s120
      %s124 = sphi 0, %s123
      %s140 = sphi 0, %s124
    $region4: #{block_forward.3} parent=1 // loop_header_branch
      %19 = sbr.rel (%p17) target = $region8
    $region5: #{block_forward.3} parent=1 // loop_body
      %s21 = ssub.s32 %s16, 1
      %s22 = ssub.s32 %s16, 2
      %s29 = sadd.s32 1, %s24
      %p30 = scmp.ge.s32.totalorder %s29, 1
      %s31 = scalar_select %p30, 0, %s29
      %s32 = sadd.s32 1, %s23
      %s33 = scalar_select %p30, %s32, %s23
      %p34 = scmp.ge.s32.totalorder %s33, 2
      %s35 = scalar_select %p34, 0, %s33
      %s36 = ssub.s32 %s23, %s35
      %s37 = ssub.s32 %s24, %s31
      %s38 = sor.u32 %s36, %s37
      %p39 = scmp.eq.s32.totalorder %s38, 0
      %s41 = sadd.s32 %s40, 1
      %s42 = scalar_select %p39, %s40, %s41
      %p45 = pneg %p39
      %p46 = scmp.eq.s32.totalorder %s16, 1
      %p47 = por %p45, %p46
      %p48 = scmp.ne.s32.totalorder %s40, %s43
      %p49 = scmp.eq.s32.totalorder %s16, 0
      %p50 = por %p48, %p49
      %p51 = scmp.ne.s32.totalorder %s40, %s43
      %p52 = scmp.eq.s32.totalorder %s21, 1
      %p53 = por %p51, %p52
      %p54 = scmp.ne.s32.totalorder %s43, %s44
      %p55 = scmp.eq.s32.totalorder %s21, 0
      %p56 = por %p54, %p55
      %p57 = scmp.ne.s32.totalorder %s43, %s44
      %p58 = scmp.eq.s32.totalorder %s22, 1
      %p59 = por %p57, %p58
      %p61 = scmp.ne.s32.totalorder %s44, %s60
      %p62 = scmp.eq.s32.totalorder %s22, 0
      %p63 = por %p61, %p62
      %s64 = ssub.s32 %s24, %s31
      %p65 = scmp.eq.s32.totalorder %s64, 0
      %s67 = sadd.s32 %s66, 1
      %s68 = scalar_select %p65, %s66, %s67
      %p71 = pneg %p65
      %p72 = scmp.eq.s32.totalorder %s16, 1
      %p73 = por %p71, %p72
      %p74 = scmp.ne.s32.totalorder %s66, %s69
      %p75 = scmp.eq.s32.totalorder %s16, 0
      %p76 = por %p74, %p75
      %p77 = scmp.ne.s32.totalorder %s66, %s69
      %p78 = scmp.eq.s32.totalorder %s21, 1
      %p79 = por %p77, %p78
      %p80 = scmp.ne.s32.totalorder %s69, %s70
      %p81 = scmp.eq.s32.totalorder %s21, 0
      %p82 = por %p80, %p81
      %p83 = scmp.ne.s32.totalorder %s69, %s70
      %p84 = scmp.eq.s32.totalorder %s22, 1
      %p85 = por %p83, %p84
      %p87 = scmp.ne.s32.totalorder %s70, %s86
      %p88 = scmp.eq.s32.totalorder %s22, 0
      %p89 = por %p87, %p88
      %s90 = ssub.s32 %s24, %s31
      %p91 = scmp.eq.s32.totalorder %s90, 0
      %s93 = sadd.s32 %s92, 1
      %s94 = scalar_select %p91, %s92, %s93
      %p97 = pneg %p91
      %p98 = scmp.eq.s32.totalorder %s16, 1
      %p99 = por %p97, %p98
      %p100 = scmp.ne.s32.totalorder %s92, %s95
      %p101 = scmp.eq.s32.totalorder %s16, 0
      %p102 = por %p100, %p101
      %p103 = scmp.ne.s32.totalorder %s92, %s95
      %p104 = scmp.eq.s32.totalorder %s21, 1
      %p105 = por %p103, %p104
      %p106 = scmp.ne.s32.totalorder %s95, %s96
      %p107 = scmp.eq.s32.totalorder %s21, 0
      %p108 = por %p106, %p107
      %p109 = scmp.ne.s32.totalorder %s95, %s96
      %p110 = scmp.eq.s32.totalorder %s22, 1
      %p111 = por %p109, %p110
      %p113 = scmp.ne.s32.totalorder %s96, %s112
      %p114 = scmp.eq.s32.totalorder %s22, 0
      %p115 = por %p113, %p114
      %s116 = ssub.s32 %s23, %s35
      %s117 = ssub.s32 %s24, %s31
      %s118 = sor.u32 %s116, %s117
      %p119 = scmp.eq.s32.totalorder %s118, 0
      %s121 = sadd.s32 %s120, 1
      %s122 = scalar_select %p119, %s120, %s121
      %p125 = pneg %p119
      %p126 = scmp.eq.s32.totalorder %s16, 1
      %p127 = por %p125, %p126
      %p128 = scmp.ne.s32.totalorder %s120, %s123
      %p129 = scmp.eq.s32.totalorder %s16, 0
      %p130 = por %p128, %p129
      %p131 = scmp.ne.s32.totalorder %s120, %s123
      %p132 = scmp.eq.s32.totalorder %s21, 1
      %p133 = por %p131, %p132
      %p134 = scmp.ne.s32.totalorder %s123, %s124
      %p135 = scmp.eq.s32.totalorder %s21, 0
      %p136 = por %p134, %p135
      %p137 = scmp.ne.s32.totalorder %s123, %s124
      %p138 = scmp.eq.s32.totalorder %s22, 1
      %p139 = por %p137, %p138
      %p141 = scmp.ne.s32.totalorder %s124, %s140
      %p142 = scmp.eq.s32.totalorder %s22, 0
      %p143 = por %p141, %p142
      %p144 = scmp.le.s32.totalorder 1, %s16
      %p145 = scmp.lt.s32.totalorder %s16, 3
      %p146 = pnand %p144, %p145
      %p147 = pneg %p146
      // Predicated region
      $region9: #{block_forward.3} parent=5 // pred_check
        _
      $region10: #{block_forward.3} parent=5 // pred_check_branch
        %149 = sbr.rel (%p146) target = $region12
      $region11: #{block_forward.3} parent=5 // pred_region
        %s150 = ssub.s32 %s16, 1
        // Predicated region
        $region13: #{block_forward.3} parent=11 // pred_check
          %p151 = pneg %p82
        $region14: #{block_forward.3} parent=11 // pred_check_branch
          %153 = sbr.rel (%p151) target = $region16
        $region15: #{block_forward.3} parent=11 // pred_region
          %s155 = ssub.s32 16, 16
          %156 = vsyncadd [#allocation6], %s155
          %s157 = smul.addr %s26, 16
          %s158 = scalar_lea.hbm %s1, %s157
          %s160 = sshll.u32 [#allocation5], 4
          %s161 = int_to_ptr.vmem [resolvable:$true] %s160
          %163 = dma.hbm_to_vmem [thread:$0]  %s158, 16, %s161, [#allocation6]
        $region16: #{block_forward.3} parent=11 // pred_fallthru
          _
        // Predicated region
        $region17: #{block_forward.3} parent=11 // pred_check
          %p164 = pneg %p108
        $region18: #{block_forward.3} parent=11 // pred_check_branch
          %166 = sbr.rel (%p164) target = $region20
        $region19: #{block_forward.3} parent=11 // pred_region
          %s168 = ssub.s32 16, 16
          %169 = vsyncadd [#allocation6], %s168
          %s170 = smul.addr %s26, 16
          %s171 = scalar_lea.hbm %s2, %s170
          %s173 = sshll.u32 [#allocation7], 4
          %s174 = int_to_ptr.vmem [resolvable:$true] %s173
          %176 = dma.hbm_to_vmem [thread:$0]  %s171, 16, %s174, [#allocation6]
        $region20: #{block_forward.3} parent=11 // pred_fallthru
          _
      $region12: #{block_forward.3} parent=5 // pred_fallthru
        _
      %p177 = scmp.lt.s32.totalorder %s16, 2
      // Predicated region
      $region21: #{block_forward.3} parent=5 // pred_check
        %p178 = pneg %p177
      $region22: #{block_forward.3} parent=5 // pred_check_branch
        %180 = sbr.rel (%p178) target = $region24
      $region23: #{block_forward.3} parent=5 // pred_region
        // Predicated region
        $region25: #{block_forward.3} parent=23 // pred_check
          %p181 = pneg %p50
        $region26: #{block_forward.3} parent=23 // pred_check_branch
          %183 = sbr.rel (%p181) target = $region28
        $region27: #{block_forward.3} parent=23 // pred_region
          %s184 = sand.u32 %s40, 1
          %s185 = scalar_lea.sflag [#allocation3], %s184
          %s186 = sand.u32 %s40, 1
          %s187 = smul.addr %s186, 32
          %s188 = scalar_lea.vmem [#allocation2], %s187
          %s190 = ssub.s32 512, 512
          %191 = vsyncadd %s185, %s190
          %s192 = smul.addr %s23, 8
          %s193 = sadd.s32 %s24, %s192
          %s194 = smul.addr %s193, 64
          %s195 = scalar_lea.hbm %s0, %s194
          %s196 = sshll.u32 %s188, 4
          %s197 = int_to_ptr.vmem [resolvable:$true] %s196
          %202 = dma.hbm_to_vmem [thread:$0]  %s195, 512, %s197, %s185, 64, 64, 4
        $region28: #{block_forward.3} parent=23 // pred_fallthru
          _
      $region24: #{block_forward.3} parent=5 // pred_fallthru
        _
      %p203 = scmp.le.s32.totalorder 1, %s16
      %p204 = scmp.lt.s32.totalorder %s16, 3
      %p205 = pnand %p203, %p204
      %p206 = pneg %p205
      // Predicated region
      $region29: #{block_forward.3} parent=5 // pred_check
        _
      $region30: #{block_forward.3} parent=5 // pred_check_branch
        %208 = sbr.rel (%p205) target = $region32
      $region31: #{block_forward.3} parent=5 // pred_region
        %s209 = ssub.s32 %s16, 1
        %s210 = sand.u32 %s43, 1
        %s211 = scalar_lea.sflag [#allocation3], %s210
        %s212 = sand.u32 %s43, 1
        %s213 = smul.addr %s212, 32
        %s214 = scalar_lea.vmem [#allocation2], %s213
        // Predicated region
        $region33: #{block_forward.3} parent=31 // pred_check
          %p215 = pneg %p56
        $region34: #{block_forward.3} parent=31 // pred_check_branch
          %217 = sbr.rel (%p215) target = $region36
        $region35: #{block_forward.3} parent=31 // pred_region
          %218 = dma.done %s211, 512
        $region36: #{block_forward.3} parent=31 // pred_fallthru
          _
        // Predicated region
        $region37: #{block_forward.3} parent=31 // pred_check
          %p219 = pneg %p82
        $region38: #{block_forward.3} parent=31 // pred_check_branch
          %221 = sbr.rel (%p219) target = $region40
        $region39: #{block_forward.3} parent=31 // pred_region
          %222 = dma.done [#allocation6], 16
        $region40: #{block_forward.3} parent=31 // pred_fallthru
          _
        // Predicated region
        $region41: #{block_forward.3} parent=31 // pred_check
          %p223 = pneg %p108
        $region42: #{block_forward.3} parent=31 // pred_check_branch
          %225 = sbr.rel (%p223) target = $region44
        $region43: #{block_forward.3} parent=31 // pred_region
          %226 = dma.done [#allocation6], 16
        $region44: #{block_forward.3} parent=31 // pred_fallthru
          _
        %s227 = sand.u32 %s43, 1
        %s228 = scalar_lea.sflag [#allocation3], %s227
        %s229 = sand.u32 %s43, 1
        %s230 = smul.addr %s229, 32
        %s231 = scalar_lea.vmem [#allocation2], %s230
        %p232 = pneg %p56
        %p233 = pneg %p53
        %p234 = pneg %p82
        %p235 = pneg %p79
        %p236 = pneg %p108
        %p237 = pneg %p105
        %p238 = pneg %p136
        %p239 = pneg %p133
        %s240 = sand.u32 %s123, 1
        %s241 = scalar_lea.sflag [#allocation4], %s240
        %s242 = sand.u32 %s123, 1
        %s243 = smul.addr %s242, 64
        %s244 = scalar_lea.vmem [#allocation8], %s243
        %v245 = vld [vmem:[%s214] sm:$0xf]
        %v246 = vld [vmem:[%s214 + $0x4] sm:$0xf]
        %v247 = vld [vmem:[%s214 + $0x8] sm:$0xf]
        %v248 = vld [vmem:[%s214 + $0xc] sm:$0xf]
        %v249 = vld [vmem:[%s214 + $0x10] sm:$0xf]
        %v250 = vld [vmem:[%s214 + $0x14] sm:$0xf]
        %v251 = vld [vmem:[%s214 + $0x18] sm:$0xf]
        %v252 = vld [vmem:[%s214 + $0x1c] sm:$0xf]
        %v253 = vunpack.c.l.bf16 %v245
        %v254 = vunpack.c.l.bf16 %v246
        %v255 = vunpack.c.l.bf16 %v247
        %v256 = vunpack.c.l.bf16 %v248
        %v257 = vunpack.c.l.bf16 %v249
        %v258 = vunpack.c.l.bf16 %v250
        %v259 = vunpack.c.l.bf16 %v251
        %v260 = vunpack.c.l.bf16 %v252
        %v261 = vld [vmem:[#allocation5] sm:$0x1]
        %v263 = vlaneseq
        %v264 = vshrl.u32 %v263, 7
        %v265 = vsub.s32 0, %v264
        %v266 = vrot.slane %v261, %v265
        %v268 = vmul.f32 %v253, %v266
        %v269 = vmul.f32 %v254, %v266
        %v270 = vmul.f32 %v255, %v266
        %v271 = vmul.f32 %v256, %v266
        %v272 = vmul.f32 %v257, %v266
        %v273 = vmul.f32 %v258, %v266
        %v274 = vmul.f32 %v259, %v266
        %v275 = vmul.f32 %v260, %v266
        %v276 = vld [vmem:[#allocation7] sm:$0x1]
        %v278 = vlaneseq
        %v279 = vshrl.u32 %v278, 7
        %v280 = vsub.s32 0, %v279
        %v281 = vrot.slane %v276, %v280
        %v283 = vadd.f32 %v268, %v281
        %v284 = vadd.f32 %v269, %v281
        %v285 = vadd.f32 %v270, %v281
        %v286 = vadd.f32 %v271, %v281
        %v287 = vadd.f32 %v272, %v281
        %v288 = vadd.f32 %v273, %v281
        %v289 = vadd.f32 %v274, %v281
        %v290 = vadd.f32 %v275, %v281
        %vm291 = vcmp.ge.f32.partialorder %v283, 0.0
        %vm292 = vcmp.ge.f32.partialorder %v284, 0.0
        %vm293 = vcmp.ge.f32.partialorder %v285, 0.0
        %vm294 = vcmp.ge.f32.partialorder %v286, 0.0
        %vm295 = vcmp.ge.f32.partialorder %v287, 0.0
        %vm296 = vcmp.ge.f32.partialorder %v288, 0.0
        %vm297 = vcmp.ge.f32.partialorder %v289, 0.0
        %vm298 = vcmp.ge.f32.partialorder %v290, 0.0
        %v299 = vmul.f32 %v283, 0.2
        %v300 = vmul.f32 %v284, 0.2
        %v301 = vmul.f32 %v285, 0.2
        %v302 = vmul.f32 %v286, 0.2
        %v303 = vmul.f32 %v287, 0.2
        %v304 = vmul.f32 %v288, 0.2
        %v305 = vmul.f32 %v289, 0.2
        %v306 = vmul.f32 %v290, 0.2
        %v307 = vsel %vm291, %v283, %v299
        %v308 = vsel %vm292, %v284, %v300
        %v309 = vsel %vm293, %v285, %v301
        %v310 = vsel %vm294, %v286, %v302
        %v311 = vsel %vm295, %v287, %v303
        %v312 = vsel %vm296, %v288, %v304
        %v313 = vsel %vm297, %v289, %v305
        %v314 = vsel %vm298, %v290, %v306
        %315 = vst [vmem:[%s244] sm:$0xff] %v307
        %316 = vst [vmem:[%s244 + $0x8] sm:$0xff] %v308
        %317 = vst [vmem:[%s244 + $0x10] sm:$0xff] %v309
        %318 = vst [vmem:[%s244 + $0x18] sm:$0xff] %v310
        %319 = vst [vmem:[%s244 + $0x20] sm:$0xff] %v311
        %320 = vst [vmem:[%s244 + $0x28] sm:$0xff] %v312
        %321 = vst [vmem:[%s244 + $0x30] sm:$0xff] %v313
        %322 = vst [vmem:[%s244 + $0x38] sm:$0xff] %v314
        %s323 = sand.u32 %s123, 1
        %s324 = scalar_lea.sflag [#allocation4], %s323
        %s325 = sand.u32 %s123, 1
        %s326 = smul.addr %s325, 64
        %s327 = scalar_lea.vmem [#allocation8], %s326
        // Predicated region
        $region45: #{block_forward.3} parent=31 // pred_check
          %p328 = pneg %p133
        $region46: #{block_forward.3} parent=31 // pred_check_branch
          %330 = sbr.rel (%p328) target = $region48
        $region47: #{block_forward.3} parent=31 // pred_region
          %s332 = ssub.s32 1024, 1024
          %333 = vsyncadd %s324, %s332
          %s334 = smul.addr %s25, 8
          %s335 = sadd.s32 %s26, %s334
          %s336 = smul.addr %s335, 128
          %s337 = scalar_lea.hbm %s3, %s336
          %s338 = sshll.u32 %s327, 4
          %s339 = int_to_ptr.vmem [resolvable:$true] %s338
          %344 = dma.vmem_to_hbm [thread:$0]  %s339, 1024, %s337, %s324, 128, 128, 8
        $region48: #{block_forward.3} parent=31 // pred_fallthru
          _
      $region32: #{block_forward.3} parent=5 // pred_fallthru
        _
      %p345 = scmp.le.s32.totalorder 2, %s16
      // Predicated region
      $region49: #{block_forward.3} parent=5 // pred_check
        %p346 = pneg %p345
      $region50: #{block_forward.3} parent=5 // pred_check_branch
        %348 = sbr.rel (%p346) target = $region52
      $region51: #{block_forward.3} parent=5 // pred_region
        %s349 = ssub.s32 %s16, 2
        // Predicated region
        $region53: #{block_forward.3} parent=51 // pred_check
          %p350 = pneg %p139
        $region54: #{block_forward.3} parent=51 // pred_check_branch
          %352 = sbr.rel (%p350) target = $region56
        $region55: #{block_forward.3} parent=51 // pred_region
          %s353 = sand.u32 %s124, 1
          %s354 = scalar_lea.sflag [#allocation4], %s353
          %s355 = sand.u32 %s124, 1
          %s356 = smul.addr %s355, 64
          %s357 = scalar_lea.vmem [#allocation8], %s356
          %358 = dma.done %s354, 1024
        $region56: #{block_forward.3} parent=51 // pred_fallthru
          _
      $region52: #{block_forward.3} parent=5 // pred_fallthru
        _
    $region6: #{block_forward.3} parent=1 // loop_footer
      %s20 = sadd.s32 1, %s16
    $region7: #{block_forward.3} parent=1 // loop_footer_branch
      %15 = sbr.rel target = $region3
    $region8: #{block_forward.3} parent=1 // loop_exit
      _
    %359 = vsyncpa [#allocation3], 1
    %s360 = scalar_lea.sflag [#allocation3], 1
    %361 = vsyncpa %s360, 1
    %362 = vsyncpa [#allocation6], 1
    %363 = vsyncpa [#allocation4], 1
    %s364 = scalar_lea.sflag [#allocation4], 1
    %365 = vsyncpa %s364, 1

// kernel: block_forward.2
$region0: #{block_forward.2}
  #allocation0 [shape = 'u32[]', space=smem, size = 0x4, offset = 0x4, fixed_abs, tag = 'smem constant byte address 0x4 - core index']
  #allocation1 [shape = 'u32[144,128]{1,0:T(1,128)}', space=vmem, size = 0x12000, scoped, tag = 'internal scratch']
  %s0 = inlined_call_operand.hbm [shape: bf16[8,9,9,4], index: 0, kind: input, shape index: {}]
  %s1 = inlined_call_operand.hbm [shape: bf16[9,4,128], index: 1, kind: input, shape index: {}]
  %s2 = inlined_call_operand.hbm [shape: bf16[2,64,128], index: 2, kind: output, shape index: {0}]
  %s3 = inlined_call_operand.hbm [shape: f32[2,1,128], index: 3, kind: output, shape index: {1}]
  %s4 = inlined_call_operand.hbm [shape: f32[2,1,128], index: 4, kind: output, shape index: {2}]
  %s5 = inlined_call_operand.hbm [shape: f32[2,1,128], index: 5, kind: output, shape index: {3}]
  %6 = xla_tuple %s2, %s3, %s4, %s5
  %s7 = sld [smem:[#allocation0]]
  $region73: #{block_forward.2} parent=0
    _
  %s9 = ssub.s32 1, %s7
  %s10 = scalar_select 0, %s9, %s7
  $region1: #{block_forward.2} parent=0
    #allocation2 [shape = 'u8[294912]{0}', space=vmem, size = 0x48000, scoped, tag = 'input window, operand 0']
    #allocation3 [shape = 's32[2]{0}', space=sflag, size = 0x8, scoped, tag = 'scoped memory for block_forward.2']
    #allocation4 [shape = 's32[2]{0}', space=sflag, size = 0x8, scoped, tag = 'scoped memory for block_forward.2']
    #allocation5 [shape = 'u8[9216]{0}', space=vmem, size = 0x2400, scoped, tag = 'input window, operand 1, single buffered']
    #allocation6 [shape = 's32[1]{0}', space=sflag, size = 0x4, scoped, tag = 'scoped memory for block_forward.2']
    #allocation7 [shape = 'u8[32768]{0}', space=vmem, size = 0x8000, scoped, tag = 'output window, operand 0']
    #allocation8 [shape = 'u8[1024]{0}', space=vmem, size = 0x400, scoped, tag = 'output window, operand 1']
    #allocation9 [shape = 's32[2]{0}', space=sflag, size = 0x8, scoped, tag = 'scoped memory for block_forward.2']
    #allocation10 [shape = 'u8[1024]{0}', space=vmem, size = 0x400, scoped, tag = 'output window, operand 2']
    #allocation11 [shape = 'u8[1024]{0}', space=vmem, size = 0x400, scoped, tag = 'output window, operand 3']
    #allocation12 [shape = 's32[2]{0}', space=sflag, size = 0x8, scoped, tag = 'scoped memory for block_forward.2']
    %11 = vsyncpa [#allocation3], 0
    %s12 = scalar_lea.sflag [#allocation3], 1
    %13 = vsyncpa %s12, 0
    %14 = vsyncpa [#allocation6], 0
    %15 = vsyncpa [#allocation4], 0
    %s16 = scalar_lea.sflag [#allocation4], 1
    %17 = vsyncpa %s16, 0
    %18 = vsyncpa [#allocation9], 0
    %s19 = scalar_lea.sflag [#allocation9], 1
    %20 = vsyncpa %s19, 0
    %21 = vsyncpa [#allocation12], 0
    %s22 = scalar_lea.sflag [#allocation12], 1
    %23 = vsyncpa %s22, 0
    loop: start=0, step=1, limit=4
    $region2: #{block_forward.2} parent=1 // loop_pre_header
      _
    $region3: #{block_forward.2} parent=1 // loop_header
      %s25 = sphi 0, %s29
      %p26 = scmp.ge.s32.totalorder %s25, 4
      %s35 = sphi 0, %s37
      %s38 = sphi 0, %s35
      %s39 = sphi 0, %s38
      %s55 = sphi 0, %s39
      %s59 = sphi 0, %s59
      %s61 = sphi 0, %s59
      %s62 = sphi 0, %s61
      %s76 = sphi 0, %s62
      %s82 = sphi 0, %s84
      %s85 = sphi 0, %s82
      %s86 = sphi 0, %s85
      %s102 = sphi 0, %s86
      %s108 = sphi 0, %s110
      %s111 = sphi 0, %s108
      %s112 = sphi 0, %s111
      %s128 = sphi 0, %s112
      %s134 = sphi 0, %s136
      %s137 = sphi 0, %s134
      %s138 = sphi 0, %s137
      %s154 = sphi 0, %s138
      %s160 = sphi 0, %s162
      %s163 = sphi 0, %s160
      %s164 = sphi 0, %s163
      %s180 = sphi 0, %s164
    $region4: #{block_forward.2} parent=1 // loop_header_branch
      %28 = sbr.rel (%p26) target = $region8
    $region5: #{block_forward.2} parent=1 // loop_body
      %s30 = ssub.s32 %s25, 1
      %s31 = ssub.s32 %s25, 2
      %s32 = sadd.s32 %s25, 1
      %s33 = ssub.s32 %s25, %s32
      %p34 = scmp.eq.s32.totalorder %s33, 0
      %s36 = sadd.s32 %s35, 1
      %s37 = scalar_select %p34, %s35, %s36
      %p40 = pneg %p34
      %p41 = scmp.eq.s32.totalorder %s25, 1
      %p42 = por %p40, %p41
      %p43 = scmp.ne.s32.totalorder %s35, %s38
      %p44 = scmp.eq.s32.totalorder %s25, 0
      %p45 = por %p43, %p44
      %p46 = scmp.ne.s32.totalorder %s35, %s38
      %p47 = scmp.eq.s32.totalorder %s30, 1
      %p48 = por %p46, %p47
      %p49 = scmp.ne.s32.totalorder %s38, %s39
      %p50 = scmp.eq.s32.totalorder %s30, 0
      %p51 = por %p49, %p50
      %p52 = scmp.ne.s32.totalorder %s38, %s39
      %p53 = scmp.eq.s32.totalorder %s31, 1
      %p54 = por %p52, %p53
      %p56 = scmp.ne.s32.totalorder %s39, %s55
      %p57 = scmp.eq.s32.totalorder %s31, 0
      %p58 = por %p56, %p57
      %s60 = sadd.s32 %s59, 1
      %p63 = scmp.eq.s32.totalorder %s25, 1
      %p64 = scmp.ne.s32.totalorder %s59, %s61
      %p65 = scmp.eq.s32.totalorder %s25, 0
      %p66 = por %p64, %p65
      %p67 = scmp.ne.s32.totalorder %s59, %s61
      %p68 = scmp.eq.s32.totalorder %s30, 1
      %p69 = por %p67, %p68
      %p70 = scmp.ne.s32.totalorder %s61, %s62
      %p71 = scmp.eq.s32.totalorder %s30, 0
      %p72 = por %p70, %p71
      %p73 = scmp.ne.s32.totalorder %s61, %s62
      %p74 = scmp.eq.s32.totalorder %s31, 1
      %p75 = por %p73, %p74
      %p77 = scmp.ne.s32.totalorder %s62, %s76
      %p78 = scmp.eq.s32.totalorder %s31, 0
      %p79 = por %p77, %p78
      %s80 = ssub.s32 %s25, %s32
      %p81 = scmp.eq.s32.totalorder %s80, 0
      %s83 = sadd.s32 %s82, 1
      %s84 = scalar_select %p81, %s82, %s83
      %p87 = pneg %p81
      %p88 = scmp.eq.s32.totalorder %s25, 1
      %p89 = por %p87, %p88
      %p90 = scmp.ne.s32.totalorder %s82, %s85
      %p91 = scmp.eq.s32.totalorder %s25, 0
      %p92 = por %p90, %p91
      %p93 = scmp.ne.s32.totalorder %s82, %s85
      %p94 = scmp.eq.s32.totalorder %s30, 1
      %p95 = por %p93, %p94
      %p96 = scmp.ne.s32.totalorder %s85, %s86
      %p97 = scmp.eq.s32.totalorder %s30, 0
      %p98 = por %p96, %p97
      %p99 = scmp.ne.s32.totalorder %s85, %s86
      %p100 = scmp.eq.s32.totalorder %s31, 1
      %p101 = por %p99, %p100
      %p103 = scmp.ne.s32.totalorder %s86, %s102
      %p104 = scmp.eq.s32.totalorder %s31, 0
      %p105 = por %p103, %p104
      %s106 = ssub.s32 %s25, %s32
      %p107 = scmp.eq.s32.totalorder %s106, 0
      %s109 = sadd.s32 %s108, 1
      %s110 = scalar_select %p107, %s108, %s109
      %p113 = pneg %p107
      %p114 = scmp.eq.s32.totalorder %s25, 1
      %p115 = por %p113, %p114
      %p116 = scmp.ne.s32.totalorder %s108, %s111
      %p117 = scmp.eq.s32.totalorder %s25, 0
      %p118 = por %p116, %p117
      %p119 = scmp.ne.s32.totalorder %s108, %s111
      %p120 = scmp.eq.s32.totalorder %s30, 1
      %p121 = por %p119, %p120
      %p122 = scmp.ne.s32.totalorder %s111, %s112
      %p123 = scmp.eq.s32.totalorder %s30, 0
      %p124 = por %p122, %p123
      %p125 = scmp.ne.s32.totalorder %s111, %s112
      %p126 = scmp.eq.s32.totalorder %s31, 1
      %p127 = por %p125, %p126
      %p129 = scmp.ne.s32.totalorder %s112, %s128
      %p130 = scmp.eq.s32.totalorder %s31, 0
      %p131 = por %p129, %p130
      %s132 = ssub.s32 %s25, %s32
      %p133 = scmp.eq.s32.totalorder %s132, 0
      %s135 = sadd.s32 %s134, 1
      %s136 = scalar_select %p133, %s134, %s135
      %p139 = pneg %p133
      %p140 = scmp.eq.s32.totalorder %s25, 1
      %p141 = por %p139, %p140
      %p142 = scmp.ne.s32.totalorder %s134, %s137
      %p143 = scmp.eq.s32.totalorder %s25, 0
      %p144 = por %p142, %p143
      %p145 = scmp.ne.s32.totalorder %s134, %s137
      %p146 = scmp.eq.s32.totalorder %s30, 1
      %p147 = por %p145, %p146
      %p148 = scmp.ne.s32.totalorder %s137, %s138
      %p149 = scmp.eq.s32.totalorder %s30, 0
      %p150 = por %p148, %p149
      %p151 = scmp.ne.s32.totalorder %s137, %s138
      %p152 = scmp.eq.s32.totalorder %s31, 1
      %p153 = por %p151, %p152
      %p155 = scmp.ne.s32.totalorder %s138, %s154
      %p156 = scmp.eq.s32.totalorder %s31, 0
      %p157 = por %p155, %p156
      %s158 = ssub.s32 %s25, %s32
      %p159 = scmp.eq.s32.totalorder %s158, 0
      %s161 = sadd.s32 %s160, 1
      %s162 = scalar_select %p159, %s160, %s161
      %p165 = pneg %p159
      %p166 = scmp.eq.s32.totalorder %s25, 1
      %p167 = por %p165, %p166
      %p168 = scmp.ne.s32.totalorder %s160, %s163
      %p169 = scmp.eq.s32.totalorder %s25, 0
      %p170 = por %p168, %p169
      %p171 = scmp.ne.s32.totalorder %s160, %s163
      %p172 = scmp.eq.s32.totalorder %s30, 1
      %p173 = por %p171, %p172
      %p174 = scmp.ne.s32.totalorder %s163, %s164
      %p175 = scmp.eq.s32.totalorder %s30, 0
      %p176 = por %p174, %p175
      %p177 = scmp.ne.s32.totalorder %s163, %s164
      %p178 = scmp.eq.s32.totalorder %s31, 1
      %p179 = por %p177, %p178
      %p181 = scmp.ne.s32.totalorder %s164, %s180
      %p182 = scmp.eq.s32.totalorder %s31, 0
      %p183 = por %p181, %p182
      %p184 = scmp.le.s32.totalorder 1, %s25
      %p185 = scmp.lt.s32.totalorder %s25, 3
      %p186 = pnand %p184, %p185
      %p187 = pneg %p186
      // Predicated region
      $region9: #{block_forward.2} parent=5 // pred_check
        _
      $region10: #{block_forward.2} parent=5 // pred_check_branch
        %189 = sbr.rel (%p186) target = $region12
      $region11: #{block_forward.2} parent=5 // pred_region
        %s190 = ssub.s32 %s25, 1
        // Predicated region
        $region13: #{block_forward.2} parent=11 // pred_check
          %p191 = pneg %p72
        $region14: #{block_forward.2} parent=11 // pred_check_branch
          %193 = sbr.rel (%p191) target = $region16
        $region15: #{block_forward.2} parent=11 // pred_region
          %s195 = ssub.s32 288, 288
          %196 = vsyncadd [#allocation6], %s195
          %s197 = sshll.u32 [#allocation5], 4
          %s198 = int_to_ptr.vmem [resolvable:$true] %s197
          %203 = dma.hbm_to_vmem [thread:$0]  %s1, 288, %s198, [#allocation6], 32, 32, 2
        $region16: #{block_forward.2} parent=11 // pred_fallthru
          _
      $region12: #{block_forward.2} parent=5 // pred_fallthru
        _
      %p204 = scmp.lt.s32.totalorder %s25, 2
      // Predicated region
      $region17: #{block_forward.2} parent=5 // pred_check
        %p205 = pneg %p204
      $region18: #{block_forward.2} parent=5 // pred_check_branch
        %207 = sbr.rel (%p205) target = $region20
      $region19: #{block_forward.2} parent=5 // pred_region
        // Predicated region
        $region21: #{block_forward.2} parent=19 // pred_check
          %p208 = pneg %p45
        $region22: #{block_forward.2} parent=19 // pred_check_branch
          %210 = sbr.rel (%p208) target = $region24
        $region23: #{block_forward.2} parent=19 // pred_region
          %s211 = sand.u32 %s35, 1
          %s212 = scalar_lea.sflag [#allocation3], %s211
          %s213 = sand.u32 %s35, 1
          %s214 = smul.addr %s213, 288
          %s215 = scalar_lea.vmem [#allocation2], %s214
          %s216 = smul.u32 4, %s25
          %s218 = ssub.s32 4608, 4608
          %219 = vsyncadd %s212, %s218
          %s220 = smul.addr %s216, 18
          %s221 = smul.addr %s220, 64
          %s222 = scalar_lea.hbm %s0, %s221
          %s223 = sshll.u32 %s215, 4
          %s224 = int_to_ptr.vmem [resolvable:$true] %s223
          %229 = dma.hbm_to_vmem [thread:$0]  %s222, 4608, %s224, %s212, 64, 64, 4
        $region24: #{block_forward.2} parent=19 // pred_fallthru
          _
      $region20: #{block_forward.2} parent=5 // pred_fallthru
        _
      %p230 = scmp.le.s32.totalorder 1, %s25
      %p231 = scmp.lt.s32.totalorder %s25, 3
      %p232 = pnand %p230, %p231
      %p233 = pneg %p232
      // Predicated region
      $region25: #{block_forward.2} parent=5 // pred_check
        _
      $region26: #{block_forward.2} parent=5 // pred_check_branch
        %235 = sbr.rel (%p232) target = $region28
      $region27: #{block_forward.2} parent=5 // pred_region
        %s236 = ssub.s32 %s25, 1
        %s237 = sand.u32 %s38, 1
        %s238 = scalar_lea.sflag [#allocation3], %s237
        %s239 = sand.u32 %s38, 1
        %s240 = smul.addr %s239, 288
        %s241 = scalar_lea.vmem [#allocation2], %s240
        // Predicated region
        $region29: #{block_forward.2} parent=27 // pred_check
          %p242 = pneg %p51
        $region30: #{block_forward.2} parent=27 // pred_check_branch
          %244 = sbr.rel (%p242) target = $region32
        $region31: #{block_forward.2} parent=27 // pred_region
          %245 = dma.done %s238, 4608
        $region32: #{block_forward.2} parent=27 // pred_fallthru
          _
        // Predicated region
        $region33: #{block_forward.2} parent=27 // pred_check
          %p246 = pneg %p72
        $region34: #{block_forward.2} parent=27 // pred_check_branch
          %248 = sbr.rel (%p246) target = $region36
        $region35: #{block_forward.2} parent=27 // pred_region
          %249 = dma.done [#allocation6], 288
        $region36: #{block_forward.2} parent=27 // pred_fallthru
          _
        %s250 = sand.u32 %s38, 1
        %s251 = scalar_lea.sflag [#allocation3], %s250
        %s252 = sand.u32 %s38, 1
        %s253 = smul.addr %s252, 288
        %s254 = scalar_lea.vmem [#allocation2], %s253
        %p255 = pneg %p51
        %p256 = pneg %p48
        %p257 = pneg %p72
        %p258 = pneg %p69
        %p259 = pneg %p98
        %p260 = pneg %p95
        %s261 = sand.u32 %s85, 1
        %s262 = scalar_lea.sflag [#allocation4], %s261
        %s263 = sand.u32 %s85, 1
        %s264 = smul.addr %s263, 32
        %s265 = scalar_lea.vmem [#allocation7], %s264
        %p266 = pneg %p124
        %p267 = pneg %p121
        %s268 = sand.u32 %s30, 1
        %s269 = scalar_lea.sflag [#allocation9], %s268
        %s270 = sand.u32 %s111, 1
        %s271 = scalar_lea.vmem [#allocation8], %s270
        %p272 = pneg %p150
        %p273 = pneg %p147
        %s274 = sand.u32 %s30, 1
        %s275 = scalar_lea.sflag [#allocation9], %s274
        %s276 = sand.u32 %s137, 1
        %s277 = scalar_lea.vmem [#allocation10], %s276
        %p278 = pneg %p176
        %p279 = pneg %p173
        %s280 = sand.u32 %s163, 1
        %s281 = scalar_lea.sflag [#allocation12], %s280
        %s282 = sand.u32 %s163, 1
        %s283 = scalar_lea.vmem [#allocation11], %s282
        %s284 = smul.u32 4, %s30
        %v286 = vld [vmem:[%s241] sm:$0xf]
        %v287 = vld [vmem:[%s241 + $0x8] sm:$0xf]
        %v288 = vld [vmem:[%s241 + $0x10] sm:$0xf]
        %v289 = vld [vmem:[%s241 + $0x18] sm:$0xf]
        %v290 = vld [vmem:[%s241 + $0x20] sm:$0xf]
        %v291 = vld [vmem:[%s241 + $0x28] sm:$0xf]
        %v292 = vld [vmem:[%s241 + $0x30] sm:$0xf]
        %v293 = vld [vmem:[%s241 + $0x38] sm:$0xf]
        %v294 = vld [vmem:[#allocation5] sm:$0x3]
        %s295 = scalar_lea.vmem %s241, 72 [#allocation2]
        %v296 = vld [vmem:[%s295] sm:$0xf]
        %v297 = vld [vmem:[%s295 + $0x8] sm:$0xf]
        %v298 = vld [vmem:[%s295 + $0x10] sm:$0xf]
        %v299 = vld [vmem:[%s295 + $0x18] sm:$0xf]
        %v300 = vld [vmem:[%s295 + $0x20] sm:$0xf]
        %v301 = vld [vmem:[%s295 + $0x28] sm:$0xf]
        %v302 = vld [vmem:[%s295 + $0x30] sm:$0xf]
        %v303 = vld [vmem:[%s295 + $0x38] sm:$0xf]
        %s304 = scalar_lea.vmem [#allocation5], 2
        %v305 = vld [vmem:[%s304] sm:$0x3]
        %v314 = vunpack.c.l.b16 %v296
        %v315 = vunpack.c.l.b16 %v297
        %v316 = vunpack.c.l.b16 %v298
        %v317 = vunpack.c.l.b16 %v299
        %v318 = vunpack.c.l.b16 %v300
        %v319 = vunpack.c.l.b16 %v301
        %v320 = vunpack.c.l.b16 %v302
        %v321 = vunpack.c.l.b16 %v303
        %v322 = vpack.c.b16 %v315, %v314
        %v323 = vpack.c.b16 %v317, %v316
        %v324 = vpack.c.b16 %v319, %v318
        %v325 = vpack.c.b16 %v321, %v320
        %vm326 = vcmask 31744
        %v328 = vsel %vm326, %v322, 0
        %v331 = vsel %vm326, %v323, 0
        %v334 = vsel %vm326, %v324, 0
        %v337 = vsel %vm326, %v325, 0
        %vm339 = vcmask 1041408
        %v341 = vsel %vm339, %v305, 0
        %343 = vmatprep.subr.bf16.mxu0 0
        %344 = vmatpush1.bf16.msra.mxu0 %v341
        %345 = vmatprep.subr.bf16.mxu0 0
        %346 = vmatpush1.bf16.msra.mxu0 0
        %347 = vmatprep.subr.bf16.mxu0 0
        %348 = vmatpush1.bf16.msra.mxu0 0
        %349 = vmatprep.subr.bf16.mxu0 0
        %350 = vmatpush1.bf16.msra.mxu0 0
        %351 = vmatprep.subr.bf16.mxu0 0
        %352 = vmatpush1.bf16.msra.mxu0 0
        %353 = vmatprep.subr.bf16.mxu0 0
        %354 = vmatpush1.bf16.msra.mxu0 0
        %355 = vmatprep.subr.bf16.mxu0 0
        %356 = vmatpush1.bf16.msra.mxu0 0
        %357 = vmatprep.subr.bf16.mxu0 0
        %358 = vmatpush1.bf16.msra.mxu0 0
        %359 = vmatprep.subr.bf16.mxu0 0
        %360 = vmatpush1.bf16.msra.mxu0 0
        %361 = vmatprep.subr.bf16.mxu0 0
        %362 = vmatpush1.bf16.msra.mxu0 0
        %363 = vmatprep.subr.bf16.mxu0 0
        %364 = vmatpush1.bf16.msra.mxu0 0
        %365 = vmatprep.subr.bf16.mxu0 0
        %366 = vmatpush1.bf16.msra.mxu0 0
        %367 = vmatprep.subr.bf16.mxu0 0
        %368 = vmatpush1.bf16.msra.mxu0 0
        %369 = vmatprep.subr.bf16.mxu0 0
        %370 = vmatpush1.bf16.msra.mxu0 0
        %371 = vmatprep.subr.bf16.mxu0 0
        %372 = vmatpush1.bf16.msra.mxu0 0
        %373 = vmatprep.subr.bf16.mxu0 0
        %374 = vmatpush1.bf16.msra.mxu0 0
        %375 = vmatprep.mubr.bf16.mxu0 0
        %376 = vmatmul.mubr.bf16.gmra.mrb[0].mxu0 %v328
        %v377 = vpop.f32.mrb[0].mxu0
        %v378 = vadd.f32 0.0, %v377
        %v379 = vpop.f32.mrb[0].mxu0
        %v380 = vpop.f32.mrb[0].mxu0
        %v381 = vadd.f32 0.0, %v380
        %v382 = vpop.f32.mrb[0].mxu0
        %383 = vmatprep.mubr.bf16.mxu0 0
        %384 = vmatmul.mubr.bf16.gmra.mrb[0].mxu0 %v331
        %v385 = vpop.f32.mrb[0].mxu0
        %v386 = vadd.f32 0.0, %v385
        %v387 = vpop.f32.mrb[0].mxu0
        %v388 = vpop.f32.mrb[0].mxu0
        %v389 = vadd.f32 0.0, %v388
        %v390 = vpop.f32.mrb[0].mxu0
        %391 = vmatprep.mubr.bf16.mxu0 0
        %392 = vmatmul.mubr.bf16.gmra.mrb[0].mxu0 %v334
        %v393 = vpop.f32.mrb[0].mxu0
        %v394 = vadd.f32 0.0, %v393
        %v395 = vpop.f32.mrb[0].mxu0
        %v396 = vpop.f32.mrb[0].mxu0
        %v397 = vadd.f32 0.0, %v396
        %v398 = vpop.f32.mrb[0].mxu0
        %399 = vmatprep.mubr.bf16.mxu0 0
        %400 = vmatmul.mubr.bf16.gmra.mrb[0].mxu0 %v337
        %v401 = vpop.f32.mrb[0].mxu0
        %v402 = vadd.f32 0.0, %v401
        %v403 = vpop.f32.mrb[0].mxu0
        %v404 = vpop.f32.mrb[0].mxu0
        %v405 = vadd.f32 0.0, %v404
        %v406 = vpop.f32.mrb[0].mxu0
        %407 = vdwg.mxu0
        %v416 = vunpack.c.l.b16 %v286
        %v417 = vunpack.c.l.b16 %v287
        %v418 = vunpack.c.l.b16 %v288
        %v419 = vunpack.c.l.b16 %v289
        %v420 = vunpack.c.l.b16 %v290
        %v421 = vunpack.c.l.b16 %v291
        %v422 = vunpack.c.l.b16 %v292
        %v423 = vunpack.c.l.b16 %v293
        %v424 = vpack.c.b16 %v417, %v416
        %v425 = vpack.c.b16 %v419, %v418
        %v426 = vpack.c.b16 %v421, %v420
        %v427 = vpack.c.b16 %v423, %v422
        %v429 = vsel %vm326, %v424, 0
        %v432 = vsel %vm326, %v425, 0
        %v435 = vsel %vm326, %v426, 0
        %v438 = vsel %vm326, %v427, 0
        %v441 = vsel %vm339, %v294, 0
        %443 = vmatprep.subr.bf16.mxu0 0
        %444 = vmatpush1.bf16.msra.mxu0 %v441
        %445 = vmatprep.subr.bf16.mxu0 0
        %446 = vmatpush1.bf16.msra.mxu0 0
        %447 = vmatprep.subr.bf16.mxu0 0
        %448 = vmatpush1.bf16.msra.mxu0 0
        %449 = vmatprep.subr.bf16.mxu0 0
        %450 = vmatpush1.bf16.msra.mxu0 0
        %451 = vmatprep.subr.bf16.mxu0 0
        %452 = vmatpush1.bf16.msra.mxu0 0
        %453 = vmatprep.subr.bf16.mxu0 0
        %454 = vmatpush1.bf16.msra.mxu0 0
        %455 = vmatprep.subr.bf16.mxu0 0
        %456 = vmatpush1.bf16.msra.mxu0 0
        %457 = vmatprep.subr.bf16.mxu0 0
        %458 = vmatpush1.bf16.msra.mxu0 0
        %459 = vmatprep.subr.bf16.mxu0 0
        %460 = vmatpush1.bf16.msra.mxu0 0
        %461 = vmatprep.subr.bf16.mxu0 0
        %462 = vmatpush1.bf16.msra.mxu0 0
        %463 = vmatprep.subr.bf16.mxu0 0
        %464 = vmatpush1.bf16.msra.mxu0 0
        %465 = vmatprep.subr.bf16.mxu0 0
        %466 = vmatpush1.bf16.msra.mxu0 0
        %467 = vmatprep.subr.bf16.mxu0 0
        %468 = vmatpush1.bf16.msra.mxu0 0
        %469 = vmatprep.subr.bf16.mxu0 0
        %470 = vmatpush1.bf16.msra.mxu0 0
        %471 = vmatprep.subr.bf16.mxu0 0
        %472 = vmatpush1.bf16.msra.mxu0 0
        %473 = vmatprep.subr.bf16.mxu0 0
        %474 = vmatpush1.bf16.msra.mxu0 0
        %475 = vmatprep.mubr.bf16.mxu0 0
        %476 = vmatmul.mubr.bf16.gmra.mrb[0].mxu0 %v429
        %v477 = vpop.f32.mrb[0].mxu0
        %v478 = vadd.f32 %v378, %v477
        %v479 = vpop.f32.mrb[0].mxu0
        %v480 = vpop.f32.mrb[0].mxu0
        %v481 = vadd.f32 %v381, %v480
        %v482 = vpop.f32.mrb[0].mxu0
        %483 = vmatprep.mubr.bf16.mxu0 0
        %484 = vmatmul.mubr.bf16.gmra.mrb[0].mxu0 %v432
        %v485 = vpop.f32.mrb[0].mxu0
        %v486 = vadd.f32 %v386, %v485
        %v487 = vpop.f32.mrb[0].mxu0
        %v488 = vpop.f32.mrb[0].mxu0
        %v489 = vadd.f32 %v389, %v488
        %v490 = vpop.f32.mrb[0].mxu0
        %491 = vmatprep.mubr.bf16.mxu0 0
        %492 = vmatmul.mubr.bf16.gmra.mrb[0].mxu0 %v435
        %v493 = vpop.f32.mrb[0].mxu0
        %v494 = vadd.f32 %v394, %v493
        %v495 = vpop.f32.mrb[0].mxu0
        %v496 = vpop.f32.mrb[0].mxu0
        %v497 = vadd.f32 %v397, %v496
        %v498 = vpop.f32.mrb[0].mxu0
        %499 = vmatprep.mubr.bf16.mxu0 0
        %500 = vmatmul.mubr.bf16.gmra.mrb[0].mxu0 %v438
        %v501 = vpop.f32.mrb[0].mxu0
        %v502 = vadd.f32 %v402, %v501
        %v503 = vpop.f32.mrb[0].mxu0
        %v504 = vpop.f32.mrb[0].mxu0
        %v505 = vadd.f32 %v405, %v504
        %v506 = vpop.f32.mrb[0].mxu0
        %507 = vdwg.mxu0
        %v508 = vld [vmem:[%s241] sm:$0xf]
        %v509 = vld [vmem:[%s241 + $0x4] sm:$0x1]
        %v510 = vld [vmem:[%s241 + $0x8] sm:$0xf]
        %v511 = vld [vmem:[%s241 + $0xc] sm:$0x1]
        %v512 = vld [vmem:[%s241 + $0x10] sm:$0xf]
        %v513 = vld [vmem:[%s241 + $0x14] sm:$0x1]
        %v514 = vld [vmem:[%s241 + $0x18] sm:$0xf]
        %v515 = vld [vmem:[%s241 + $0x1c] sm:$0x1]
        %v516 = vld [vmem:[%s241 + $0x20] sm:$0xf]
        %v517 = vld [vmem:[%s241 + $0x24] sm:$0x1]
        %v518 = vld [vmem:[%s241 + $0x28] sm:$0xf]
        %v519 = vld [vmem:[%s241 + $0x2c] sm:$0x1]
        %v520 = vld [vmem:[%s241 + $0x30] sm:$0xf]
        %v521 = vld [vmem:[%s241 + $0x34] sm:$0x1]
        %v522 = vld [vmem:[%s241 + $0x38] sm:$0xf]
        %v523 = vld [vmem:[%s241 + $0x3c] sm:$0x1]
        %vm524 = vsmask.f32 3328
        %vm525 = vsmask.f32 7440
        %vm526 = vmor %vm524, %vm525
        %v528 = vshrl.u32 %v508, 16
        %v530 = vrot.slane %v528, 4
        %v531 = vshll.u32 %v508, 16
        %v533 = vrot.slane %v531, 5
        %v534 = vor.u32 %v530, %v533
        %v535 = vrot.slane %v534, 4
        %v537 = vshll.u32 %v509, 16
        %v539 = vrot.slane %v537, 5
        %v540 = vsel %vm526, %v535, %v539
        %v542 = vshrl.u32 %v510, 16
        %v544 = vrot.slane %v542, 4
        %v545 = vshll.u32 %v510, 16
        %v547 = vrot.slane %v545, 5
        %v548 = vor.u32 %v544, %v547
        %v549 = vrot.slane %v548, 4
        %v551 = vshll.u32 %v511, 16
        %v553 = vrot.slane %v551, 5
        %v554 = vsel %vm526, %v549, %v553
        %v556 = vshrl.u32 %v512, 16
        %v558 = vrot.slane %v556, 4
        %v559 = vshll.u32 %v512, 16
        %v561 = vrot.slane %v559, 5
        %v562 = vor.u32 %v558, %v561
        %v563 = vrot.slane %v562, 4
        %v565 = vshll.u32 %v513, 16
        %v567 = vrot.slane %v565, 5
        %v568 = vsel %vm526, %v563, %v567
        %v570 = vshrl.u32 %v514, 16
        %v572 = vrot.slane %v570, 4
        %v573 = vshll.u32 %v514, 16
        %v575 = vrot.slane %v573, 5
        %v576 = vor.u32 %v572, %v575
        %v577 = vrot.slane %v576, 4
        %v579 = vshll.u32 %v515, 16
        %v581 = vrot.slane %v579, 5
        %v582 = vsel %vm526, %v577, %v581
        %v584 = vshrl.u32 %v516, 16
        %v586 = vrot.slane %v584, 4
        %v587 = vshll.u32 %v516, 16
        %v589 = vrot.slane %v587, 5
        %v590 = vor.u32 %v586, %v589
        %v591 = vrot.slane %v590, 4
        %v593 = vshll.u32 %v517, 16
        %v595 = vrot.slane %v593, 5
        %v596 = vsel %vm526, %v591, %v595
        %v598 = vshrl.u32 %v518, 16
        %v600 = vrot.slane %v598, 4
        %v601 = vshll.u32 %v518, 16
        %v603 = vrot.slane %v601, 5
        %v604 = vor.u32 %v600, %v603
        %v605 = vrot.slane %v604, 4
        %v607 = vshll.u32 %v519, 16
        %v609 = vrot.slane %v607, 5
        %v610 = vsel %vm526, %v605, %v609
        %v612 = vshrl.u32 %v520, 16
        %v614 = vrot.slane %v612, 4
        %v615 = vshll.u32 %v520, 16
        %v617 = vrot.slane %v615, 5
        %v618 = vor.u32 %v614, %v617
        %v619 = vrot.slane %v618, 4
        %v621 = vshll.u32 %v521, 16
        %v623 = vrot.slane %v621, 5
        %v624 = vsel %vm526, %v619, %v623
        %v626 = vshrl.u32 %v522, 16
        %v628 = vrot.slane %v626, 4
        %v629 = vshll.u32 %v522, 16
        %v631 = vrot.slane %v629, 5
        %v632 = vor.u32 %v628, %v631
        %v633 = vrot.slane %v632, 4
        %v635 = vshll.u32 %v523, 16
        %v637 = vrot.slane %v635, 5
        %v638 = vsel %vm526, %v633, %v637
        %s639 = scalar_lea.vmem [#allocation5], 4
        %v640 = vld [vmem:[%s639] sm:$0x3]
        %v641 = vunpack.c.l.b16 %v540
        %v642 = vunpack.c.l.b16 %v554
        %v643 = vunpack.c.l.b16 %v568
        %v644 = vunpack.c.l.b16 %v582
        %v645 = vunpack.c.l.b16 %v596
        %v646 = vunpack.c.l.b16 %v610
        %v647 = vunpack.c.l.b16 %v624
        %v648 = vunpack.c.l.b16 %v638
        %v649 = vpack.c.b16 %v642, %v641
        %v650 = vpack.c.b16 %v644, %v643
        %v651 = vpack.c.b16 %v646, %v645
        %v652 = vpack.c.b16 %v648, %v647
        %v654 = vsel %vm326, %v649, 0
        %v657 = vsel %vm326, %v650, 0
        %v660 = vsel %vm326, %v651, 0
        %v663 = vsel %vm326, %v652, 0
        %v666 = vsel %vm339, %v640, 0
        %668 = vmatprep.subr.bf16.mxu0 0
        %669 = vmatpush1.bf16.msra.mxu0 %v666
        %670 = vmatprep.subr.bf16.mxu0 0
        %671 = vmatpush1.bf16.msra.mxu0 0
        %672 = vmatprep.subr.bf16.mxu0 0
        %673 = vmatpush1.bf16.msra.mxu0 0
        %674 = vmatprep.subr.bf16.mxu0 0
        %675 = vmatpush1.bf16.msra.mxu0 0
        %676 = vmatprep.subr.bf16.mxu0 0
        %677 = vmatpush1.bf16.msra.mxu0 0
        %678 = vmatprep.subr.bf16.mxu0 0
        %679 = vmatpush1.bf16.msra.mxu0 0
        %680 = vmatprep.subr.bf16.mxu0 0
        %681 = vmatpush1.bf16.msra.mxu0 0
        %682 = vmatprep.subr.bf16.mxu0 0
        %683 = vmatpush1.bf16.msra.mxu0 0
        %684 = vmatprep.subr.bf16.mxu0 0
        %685 = vmatpush1.bf16.msra.mxu0 0
        %686 = vmatprep.subr.bf16.mxu0 0
        %687 = vmatpush1.bf16.msra.mxu0 0
        %688 = vmatprep.subr.bf16.mxu0 0
        %689 = vmatpush1.bf16.msra.mxu0 0
        %690 = vmatprep.subr.bf16.mxu0 0
        %691 = vmatpush1.bf16.msra.mxu0 0
        %692 = vmatprep.subr.bf16.mxu0 0
        %693 = vmatpush1.bf16.msra.mxu0 0
        %694 = vmatprep.subr.bf16.mxu0 0
        %695 = vmatpush1.bf16.msra.mxu0 0
        %696 = vmatprep.subr.bf16.mxu0 0
        %697 = vmatpush1.bf16.msra.mxu0 0
        %698 = vmatprep.subr.bf16.mxu0 0
        %699 = vmatpush1.bf16.msra.mxu0 0
        %700 = vmatprep.mubr.bf16.mxu0 0
        %701 = vmatmul.mubr.bf16.gmra.mrb[0].mxu0 %v654
        %v702 = vpop.f32.mrb[0].mxu0
        %v703 = vadd.f32 0.0, %v702
        %v704 = vpop.f32.mrb[0].mxu0
        %v705 = vpop.f32.mrb[0].mxu0
        %v706 = vadd.f32 0.0, %v705
        %v707 = vpop.f32.mrb[0].mxu0
        %708 = vmatprep.mubr.bf16.mxu0 0
        %709 = vmatmul.mubr.bf16.gmra.mrb[0].mxu0 %v657
        %v710 = vpop.f32.mrb[0].mxu0
        %v711 = vadd.f32 0.0, %v710
        %v712 = vpop.f32.mrb[0].mxu0
        %v713 = vpop.f32.mrb[0].mxu0
        %v714 = vadd.f32 0.0, %v713
        %v715 = vpop.f32.mrb[0].mxu0
        %716 = vmatprep.mubr.bf16.mxu0 0
        %717 = vmatmul.mubr.bf16.gmra.mrb[0].mxu0 %v660
        %v718 = vpop.f32.mrb[0].mxu0
        %v719 = vadd.f32 0.0, %v718
        %v720 = vpop.f32.mrb[0].mxu0
        %v721 = vpop.f32.mrb[0].mxu0
        %v722 = vadd.f32 0.0, %v721
        %v723 = vpop.f32.mrb[0].mxu0
        %724 = vmatprep.mubr.bf16.mxu0 0
        %725 = vmatmul.mubr.bf16.gmra.mrb[0].mxu0 %v663
        %v726 = vpop.f32.mrb[0].mxu0
        %v727 = vadd.f32 0.0, %v726
        %v728 = vpop.f32.mrb[0].mxu0
        %v729 = vpop.f32.mrb[0].mxu0
        %v730 = vadd.f32 0.0, %v729
        %v731 = vpop.f32.mrb[0].mxu0
        %732 = vdwg.mxu0
        %v733 = vadd.f32 %v478, %v703
        %v734 = vadd.f32 %v481, %v706
        %v735 = vadd.f32 %v486, %v711
        %v736 = vadd.f32 %v489, %v714
        %v737 = vadd.f32 %v494, %v719
        %v738 = vadd.f32 %v497, %v722
        %v739 = vadd.f32 %v502, %v727
        %v740 = vadd.f32 %v505, %v730
        %s741 = scalar_lea.vmem %s241, 144 [#allocation2]
        %v742 = vld [vmem:[%s741] sm:$0xf]
        %v743 = vld [vmem:[%s741 + $0x8] sm:$0xf]
        %v744 = vld [vmem:[%s741 + $0x10] sm:$0xf]
        %v745 = vld [vmem:[%s741 + $0x18] sm:$0xf]
        %v746 = vld [vmem:[%s741 + $0x20] sm:$0xf]
        %v747 = vld [vmem:[%s741 + $0x28] sm:$0xf]
        %v748 = vld [vmem:[%s741 + $0x30] sm:$0xf]
        %v749 = vld [vmem:[%s741 + $0x38] sm:$0xf]
        %s750 = scalar_lea.vmem [#allocation5], 6
        %v751 = vld [vmem:[%s750] sm:$0x3]
        %v760 = vunpack.c.l.b16 %v742
        %v761 = vunpack.c.l.b16 %v743
        %v762 = vunpack.c.l.b16 %v744
        %v763 = vunpack.c.l.b16 %v745
        %v764 = vunpack.c.l.b16 %v746
        %v765 = vunpack.c.l.b16 %v747
        %v766 = vunpack.c.l.b16 %v748
        %v767 = vunpack.c.l.b16 %v749
        %v768 = vpack.c.b16 %v761, %v760
        %v769 = vpack.c.b16 %v763, %v762
        %v770 = vpack.c.b16 %v765, %v764
        %v771 = vpack.c.b16 %v767, %v766
        %v773 = vsel %vm326, %v768, 0
        %v776 = vsel %vm326, %v769, 0
        %v779 = vsel %vm326, %v770, 0
        %v782 = vsel %vm326, %v771, 0
        %v785 = vsel %vm339, %v751, 0
        %787 = vmatprep.subr.bf16.mxu0 0
        %788 = vmatpush1.bf16.msra.mxu0 %v785
        %789 = vmatprep.subr.bf16.mxu0 0
        %790 = vmatpush1.bf16.msra.mxu0 0
        %791 = vmatprep.subr.bf16.mxu0 0
        %792 = vmatpush1.bf16.msra.mxu0 0
        %793 = vmatprep.subr.bf16.mxu0 0
        %794 = vmatpush1.bf16.msra.mxu0 0
        %795 = vmatprep.subr.bf16.mxu0 0
        %796 = vmatpush1.bf16.msra.mxu0 0
        %797 = vmatprep.subr.bf16.mxu0 0
        %798 = vmatpush1.bf16.msra.mxu0 0
        %799 = vmatprep.subr.bf16.mxu0 0
        %800 = vmatpush1.bf16.msra.mxu0 0
        %801 = vmatprep.subr.bf16.mxu0 0
        %802 = vmatpush1.bf16.msra.mxu0 0
        %803 = vmatprep.subr.bf16.mxu0 0
        %804 = vmatpush1.bf16.msra.mxu0 0
        %805 = vmatprep.subr.bf16.mxu0 0
        %806 = vmatpush1.bf16.msra.mxu0 0
        %807 = vmatprep.subr.bf16.mxu0 0
        %808 = vmatpush1.bf16.msra.mxu0 0
        %809 = vmatprep.subr.bf16.mxu0 0
        %810 = vmatpush1.bf16.msra.mxu0 0
        %811 = vmatprep.subr.bf16.mxu0 0
        %812 = vmatpush1.bf16.msra.mxu0 0
        %813 = vmatprep.subr.bf16.mxu0 0
        %814 = vmatpush1.bf16.msra.mxu0 0
        %815 = vmatprep.subr.bf16.mxu0 0
        %816 = vmatpush1.bf16.msra.mxu0 0
        %817 = vmatprep.subr.bf16.mxu0 0
        %818 = vmatpush1.bf16.msra.mxu0 0
        %819 = vmatprep.mubr.bf16.mxu0 0
        %820 = vmatmul.mubr.bf16.gmra.mrb[0].mxu0 %v773
        %v821 = vpop.f32.mrb[0].mxu0
        %v822 = vadd.f32 0.0, %v821
        %v823 = vpop.f32.mrb[0].mxu0
        %v824 = vpop.f32.mrb[0].mxu0
        %v825 = vadd.f32 0.0, %v824
        %v826 = vpop.f32.mrb[0].mxu0
        %827 = vmatprep.mubr.bf16.mxu0 0
        %828 = vmatmul.mubr.bf16.gmra.mrb[0].mxu0 %v776
        %v829 = vpop.f32.mrb[0].mxu0
        %v830 = vadd.f32 0.0, %v829
        %v831 = vpop.f32.mrb[0].mxu0
        %v832 = vpop.f32.mrb[0].mxu0
        %v833 = vadd.f32 0.0, %v832
        %v834 = vpop.f32.mrb[0].mxu0
        %835 = vmatprep.mubr.bf16.mxu0 0
        %836 = vmatmul.mubr.bf16.gmra.mrb[0].mxu0 %v779
        %v837 = vpop.f32.mrb[0].mxu0
        %v838 = vadd.f32 0.0, %v837
        %v839 = vpop.f32.mrb[0].mxu0
        %v840 = vpop.f32.mrb[0].mxu0
        %v841 = vadd.f32 0.0, %v840
        %v842 = vpop.f32.mrb[0].mxu0
        %843 = vmatprep.mubr.bf16.mxu0 0
        %844 = vmatmul.mubr.bf16.gmra.mrb[0].mxu0 %v782
        %v845 = vpop.f32.mrb[0].mxu0
        %v846 = vadd.f32 0.0, %v845
        %v847 = vpop.f32.mrb[0].mxu0
        %v848 = vpop.f32.mrb[0].mxu0
        %v849 = vadd.f32 0.0, %v848
        %v850 = vpop.f32.mrb[0].mxu0
        %851 = vdwg.mxu0
        %v852 = vadd.f32 %v733, %v822
        %v853 = vadd.f32 %v734, %v825
        %v854 = vadd.f32 %v735, %v830
        %v855 = vadd.f32 %v736, %v833
        %v856 = vadd.f32 %v737, %v838
        %v857 = vadd.f32 %v738, %v841
        %v858 = vadd.f32 %v739, %v846
        %v859 = vadd.f32 %v740, %v849
        %s860 = scalar_lea.vmem %s241, 216 [#allocation2]
        %v861 = vld [vmem:[%s860] sm:$0xf]
        %v862 = vld [vmem:[%s860 + $0x8] sm:$0xf]
        %v863 = vld [vmem:[%s860 + $0x10] sm:$0xf]
        %v864 = vld [vmem:[%s860 + $0x18] sm:$0xf]
        %v865 = vld [vmem:[%s860 + $0x20] sm:$0xf]
        %v866 = vld [vmem:[%s860 + $0x28] sm:$0xf]
        %v867 = vld [vmem:[%s860 + $0x30] sm:$0xf]
        %v868 = vld [vmem:[%s860 + $0x38] sm:$0xf]
        %s869 = scalar_lea.vmem [#allocation5], 8
        %v870 = vld [vmem:[%s869] sm:$0x3]
        %v879 = vunpack.c.l.b16 %v861
        %v880 = vunpack.c.l.b16 %v862
        %v881 = vunpack.c.l.b16 %v863
        %v882 = vunpack.c.l.b16 %v864
        %v883 = vunpack.c.l.b16 %v865
        %v884 = vunpack.c.l.b16 %v866
        %v885 = vunpack.c.l.b16 %v867
        %v886 = vunpack.c.l.b16 %v868
        %v887 = vpack.c.b16 %v880, %v879
        %v888 = vpack.c.b16 %v882, %v881
        %v889 = vpack.c.b16 %v884, %v883
        %v890 = vpack.c.b16 %v886, %v885
        %v892 = vsel %vm326, %v887, 0
        %v895 = vsel %vm326, %v888, 0
        %v898 = vsel %vm326, %v889, 0
        %v901 = vsel %vm326, %v890, 0
        %v904 = vsel %vm339, %v870, 0
        %906 = vmatprep.subr.bf16.mxu0 0
        %907 = vmatpush1.bf16.msra.mxu0 %v904
        %908 = vmatprep.subr.bf16.mxu0 0
        %909 = vmatpush1.bf16.msra.mxu0 0
        %910 = vmatprep.subr.bf16.mxu0 0
        %911 = vmatpush1.bf16.msra.mxu0 0
        %912 = vmatprep.subr.bf16.mxu0 0
        %913 = vmatpush1.bf16.msra.mxu0 0
        %914 = vmatprep.subr.bf16.mxu0 0
        %915 = vmatpush1.bf16.msra.mxu0 0
        %916 = vmatprep.subr.bf16.mxu0 0
        %917 = vmatpush1.bf16.msra.mxu0 0
        %918 = vmatprep.subr.bf16.mxu0 0
        %919 = vmatpush1.bf16.msra.mxu0 0
        %920 = vmatprep.subr.bf16.mxu0 0
        %921 = vmatpush1.bf16.msra.mxu0 0
        %922 = vmatprep.subr.bf16.mxu0 0
        %923 = vmatpush1.bf16.msra.mxu0 0
        %924 = vmatprep.subr.bf16.mxu0 0
        %925 = vmatpush1.bf16.msra.mxu0 0
        %926 = vmatprep.subr.bf16.mxu0 0
        %927 = vmatpush1.bf16.msra.mxu0 0
        %928 = vmatprep.subr.bf16.mxu0 0
        %929 = vmatpush1.bf16.msra.mxu0 0
        %930 = vmatprep.subr.bf16.mxu0 0
        %931 = vmatpush1.bf16.msra.mxu0 0
        %932 = vmatprep.subr.bf16.mxu0 0
        %933 = vmatpush1.bf16.msra.mxu0 0
        %934 = vmatprep.subr.bf16.mxu0 0
        %935 = vmatpush1.bf16.msra.mxu0 0
        %936 = vmatprep.subr.bf16.mxu0 0
        %937 = vmatpush1.bf16.msra.mxu0 0
        %938 = vmatprep.mubr.bf16.mxu0 0
        %939 = vmatmul.mubr.bf16.gmra.mrb[0].mxu0 %v892
        %v940 = vpop.f32.mrb[0].mxu0
        %v941 = vadd.f32 0.0, %v940
        %v942 = vpop.f32.mrb[0].mxu0
        %v943 = vpop.f32.mrb[0].mxu0
        %v944 = vadd.f32 0.0, %v943
        %v945 = vpop.f32.mrb[0].mxu0
        %946 = vmatprep.mubr.bf16.mxu0 0
        %947 = vmatmul.mubr.bf16.gmra.mrb[0].mxu0 %v895
        %v948 = vpop.f32.mrb[0].mxu0
        %v949 = vadd.f32 0.0, %v948
        %v950 = vpop.f32.mrb[0].mxu0
        %v951 = vpop.f32.mrb[0].mxu0
        %v952 = vadd.f32 0.0, %v951
        %v953 = vpop.f32.mrb[0].mxu0
        %954 = vmatprep.mubr.bf16.mxu0 0
        %955 = vmatmul.mubr.bf16.gmra.mrb[0].mxu0 %v898
        %v956 = vpop.f32.mrb[0].mxu0
        %v957 = vadd.f32 0.0, %v956
        %v958 = vpop.f32.mrb[0].mxu0
        %v959 = vpop.f32.mrb[0].mxu0
        %v960 = vadd.f32 0.0, %v959
        %v961 = vpop.f32.mrb[0].mxu0
        %962 = vmatprep.mubr.bf16.mxu0 0
        %963 = vmatmul.mubr.bf16.gmra.mrb[0].mxu0 %v901
        %v964 = vpop.f32.mrb[0].mxu0
        %v965 = vadd.f32 0.0, %v964
        %v966 = vpop.f32.mrb[0].mxu0
        %v967 = vpop.f32.mrb[0].mxu0
        %v968 = vadd.f32 0.0, %v967
        %v969 = vpop.f32.mrb[0].mxu0
        %970 = vdwg.mxu0
        %v971 = vadd.f32 %v852, %v941
        %v972 = vadd.f32 %v853, %v944
        %v973 = vadd.f32 %v854, %v949
        %v974 = vadd.f32 %v855, %v952
        %v975 = vadd.f32 %v856, %v957
        %v976 = vadd.f32 %v857, %v960
        %v977 = vadd.f32 %v858, %v965
        %v978 = vadd.f32 %v859, %v968
        %v979 = vld [vmem:[%s741] sm:$0xf]
        %v980 = vld [vmem:[%s741 + $0x4] sm:$0x1]
        %v981 = vld [vmem:[%s741 + $0x8] sm:$0xf]
        %v982 = vld [vmem:[%s741 + $0xc] sm:$0x1]
        %v983 = vld [vmem:[%s741 + $0x10] sm:$0xf]
        %v984 = vld [vmem:[%s741 + $0x14] sm:$0x1]
        %v985 = vld [vmem:[%s741 + $0x18] sm:$0xf]
        %v986 = vld [vmem:[%s741 + $0x1c] sm:$0x1]
        %v987 = vld [vmem:[%s741 + $0x20] sm:$0xf]
        %v988 = vld [vmem:[%s741 + $0x24] sm:$0x1]
        %v989 = vld [vmem:[%s741 + $0x28] sm:$0xf]
        %v990 = vld [vmem:[%s741 + $0x2c] sm:$0x1]
        %v991 = vld [vmem:[%s741 + $0x30] sm:$0xf]
        %v992 = vld [vmem:[%s741 + $0x34] sm:$0x1]
        %v993 = vld [vmem:[%s741 + $0x38] sm:$0xf]
        %v994 = vld [vmem:[%s741 + $0x3c] sm:$0x1]
        %v996 = vshrl.u32 %v979, 16
        %v998 = vrot.slane %v996, 4
        %v999 = vshll.u32 %v979, 16
        %v1001 = vrot.slane %v999, 5
        %v1002 = vor.u32 %v998, %v1001
        %v1003 = vrot.slane %v1002, 4
        %v1005 = vshll.u32 %v980, 16
        %v1007 = vrot.slane %v1005, 5
        %v1008 = vsel %vm526, %v1003, %v1007
        %v1010 = vshrl.u32 %v981, 16
        %v1012 = vrot.slane %v1010, 4
        %v1013 = vshll.u32 %v981, 16
        %v1015 = vrot.slane %v1013, 5
        %v1016 = vor.u32 %v1012, %v1015
        %v1017 = vrot.slane %v1016, 4
        %v1019 = vshll.u32 %v982, 16
        %v1021 = vrot.slane %v1019, 5
        %v1022 = vsel %vm526, %v1017, %v1021
        %v1024 = vshrl.u32 %v983, 16
        %v1026 = vrot.slane %v1024, 4
        %v1027 = vshll.u32 %v983, 16
        %v1029 = vrot.slane %v1027, 5
        %v1030 = vor.u32 %v1026, %v1029
        %v1031 = vrot.slane %v1030, 4
        %v1033 = vshll.u32 %v984, 16
        %v1035 = vrot.slane %v1033, 5
        %v1036 = vsel %vm526, %v1031, %v1035
        %v1038 = vshrl.u32 %v985, 16
        %v1040 = vrot.slane %v1038, 4
        %v1041 = vshll.u32 %v985, 16
        %v1043 = vrot.slane %v1041, 5
        %v1044 = vor.u32 %v1040, %v1043
        %v1045 = vrot.slane %v1044, 4
        %v1047 = vshll.u32 %v986, 16
        %v1049 = vrot.slane %v1047, 5
        %v1050 = vsel %vm526, %v1045, %v1049
        %v1052 = vshrl.u32 %v987, 16
        %v1054 = vrot.slane %v1052, 4
        %v1055 = vshll.u32 %v987, 16
        %v1057 = vrot.slane %v1055, 5
        %v1058 = vor.u32 %v1054, %v1057
        %v1059 = vrot.slane %v1058, 4
        %v1061 = vshll.u32 %v988, 16
        %v1063 = vrot.slane %v1061, 5
        %v1064 = vsel %vm526, %v1059, %v1063
        %v1066 = vshrl.u32 %v989, 16
        %v1068 = vrot.slane %v1066, 4
        %v1069 = vshll.u32 %v989, 16
        %v1071 = vrot.slane %v1069, 5
        %v1072 = vor.u32 %v1068, %v1071
        %v1073 = vrot.slane %v1072, 4
        %v1075 = vshll.u32 %v990, 16
        %v1077 = vrot.slane %v1075, 5
        %v1078 = vsel %vm526, %v1073, %v1077
        %v1080 = vshrl.u32 %v991, 16
        %v1082 = vrot.slane %v1080, 4
        %v1083 = vshll.u32 %v991, 16
        %v1085 = vrot.slane %v1083, 5
        %v1086 = vor.u32 %v1082, %v1085
        %v1087 = vrot.slane %v1086, 4
        %v1089 = vshll.u32 %v992, 16
        %v1091 = vrot.slane %v1089, 5
        %v1092 = vsel %vm526, %v1087, %v1091
        %v1094 = vshrl.u32 %v993, 16
        %v1096 = vrot.slane %v1094, 4
        %v1097 = vshll.u32 %v993, 16
        %v1099 = vrot.slane %v1097, 5
        %v1100 = vor.u32 %v1096, %v1099
        %v1101 = vrot.slane %v1100, 4
        %v1103 = vshll.u32 %v994, 16
        %v1105 = vrot.slane %v1103, 5
        %v1106 = vsel %vm526, %v1101, %v1105
        %s1107 = scalar_lea.vmem [#allocation5], 10
        %v1108 = vld [vmem:[%s1107] sm:$0x3]
        %v1109 = vunpack.c.l.b16 %v1008
        %v1110 = vunpack.c.l.b16 %v1022
        %v1111 = vunpack.c.l.b16 %v1036
        %v1112 = vunpack.c.l.b16 %v1050
        %v1113 = vunpack.c.l.b16 %v1064
        %v1114 = vunpack.c.l.b16 %v1078
        %v1115 = vunpack.c.l.b16 %v1092
        %v1116 = vunpack.c.l.b16 %v1106
        %v1117 = vpack.c.b16 %v1110, %v1109
        %v1118 = vpack.c.b16 %v1112, %v1111
        %v1119 = vpack.c.b16 %v1114, %v1113
        %v1120 = vpack.c.b16 %v1116, %v1115
        %v1122 = vsel %vm326, %v1117, 0
        %v1125 = vsel %vm326, %v1118, 0
        %v1128 = vsel %vm326, %v1119, 0
        %v1131 = vsel %vm326, %v1120, 0
        %v1134 = vsel %vm339, %v1108, 0
        %1136 = vmatprep.subr.bf16.mxu0 0
        %1137 = vmatpush1.bf16.msra.mxu0 %v1134
        %1138 = vmatprep.subr.bf16.mxu0 0
        %1139 = vmatpush1.bf16.msra.mxu0 0
        %1140 = vmatprep.subr.bf16.mxu0 0
        %1141 = vmatpush1.bf16.msra.mxu0 0
        %1142 = vmatprep.subr.bf16.mxu0 0
        %1143 = vmatpush1.bf16.msra.mxu0 0
        %1144 = vmatprep.subr.bf16.mxu0 0
        %1145 = vmatpush1.bf16.msra.mxu0 0
        %1146 = vmatprep.subr.bf16.mxu0 0
        %1147 = vmatpush1.bf16.msra.mxu0 0
        %1148 = vmatprep.subr.bf16.mxu0 0
        %1149 = vmatpush1.bf16.msra.mxu0 0
        %1150 = vmatprep.subr.bf16.mxu0 0
        %1151 = vmatpush1.bf16.msra.mxu0 0
        %1152 = vmatprep.subr.bf16.mxu0 0
        %1153 = vmatpush1.bf16.msra.mxu0 0
        %1154 = vmatprep.subr.bf16.mxu0 0
        %1155 = vmatpush1.bf16.msra.mxu0 0
        %1156 = vmatprep.subr.bf16.mxu0 0
        %1157 = vmatpush1.bf16.msra.mxu0 0
        %1158 = vmatprep.subr.bf16.mxu0 0
        %1159 = vmatpush1.bf16.msra.mxu0 0
        %1160 = vmatprep.subr.bf16.mxu0 0
        %1161 = vmatpush1.bf16.msra.mxu0 0
        %1162 = vmatprep.subr.bf16.mxu0 0
        %1163 = vmatpush1.bf16.msra.mxu0 0
        %1164 = vmatprep.subr.bf16.mxu0 0
        %1165 = vmatpush1.bf16.msra.mxu0 0
        %1166 = vmatprep.subr.bf16.mxu0 0
        %1167 = vmatpush1.bf16.msra.mxu0 0
        %1168 = vmatprep.mubr.bf16.mxu0 0
        %1169 = vmatmul.mubr.bf16.gmra.mrb[0].mxu0 %v1122
        %v1170 = vpop.f32.mrb[0].mxu0
        %v1171 = vadd.f32 0.0, %v1170
        %v1172 = vpop.f32.mrb[0].mxu0
        %v1173 = vpop.f32.mrb[0].mxu0
        %v1174 = vadd.f32 0.0, %v1173
        %v1175 = vpop.f32.mrb[0].mxu0
        %1176 = vmatprep.mubr.bf16.mxu0 0
        %1177 = vmatmul.mubr.bf16.gmra.mrb[0].mxu0 %v1125
        %v1178 = vpop.f32.mrb[0].mxu0
        %v1179 = vadd.f32 0.0, %v1178
        %v1180 = vpop.f32.mrb[0].mxu0
        %v1181 = vpop.f32.mrb[0].mxu0
        %v1182 = vadd.f32 0.0, %v1181
        %v1183 = vpop.f32.mrb[0].mxu0
        %1184 = vmatprep.mubr.bf16.mxu0 0
        %1185 = vmatmul.mubr.bf16.gmra.mrb[0].mxu0 %v1128
        %v1186 = vpop.f32.mrb[0].mxu0
        %v1187 = vadd.f32 0.0, %v1186
        %v1188 = vpop.f32.mrb[0].mxu0
        %v1189 = vpop.f32.mrb[0].mxu0
        %v1190 = vadd.f32 0.0, %v1189
        %v1191 = vpop.f32.mrb[0].mxu0
        %1192 = vmatprep.mubr.bf16.mxu0 0
        %1193 = vmatmul.mubr.bf16.gmra.mrb[0].mxu0 %v1131
        %v1194 = vpop.f32.mrb[0].mxu0
        %v1195 = vadd.f32 0.0, %v1194
        %v1196 = vpop.f32.mrb[0].mxu0
        %v1197 = vpop.f32.mrb[0].mxu0
        %v1198 = vadd.f32 0.0, %v1197
        %v1199 = vpop.f32.mrb[0].mxu0
        %1200 = vdwg.mxu0
        %v1201 = vadd.f32 %v971, %v1171
        %v1202 = vadd.f32 %v972, %v1174
        %v1203 = vadd.f32 %v973, %v1179
        %v1204 = vadd.f32 %v974, %v1182
        %v1205 = vadd.f32 %v975, %v1187
        %v1206 = vadd.f32 %v976, %v1190
        %v1207 = vadd.f32 %v977, %v1195
        %v1208 = vadd.f32 %v978, %v1198
        %s1209 = scalar_lea.vmem %s241, 8 [#allocation2]
        %v1210 = vld [vmem:[%s1209] sm:$0xf]
        %v1211 = vld [vmem:[%s1209 + $0x8] sm:$0xf]
        %v1212 = vld [vmem:[%s1209 + $0x10] sm:$0xf]
        %v1213 = vld [vmem:[%s1209 + $0x18] sm:$0xf]
        %v1214 = vld [vmem:[%s1209 + $0x20] sm:$0xf]
        %v1215 = vld [vmem:[%s1209 + $0x28] sm:$0xf]
        %v1216 = vld [vmem:[%s1209 + $0x30] sm:$0xf]
        %v1217 = vld [vmem:[%s1209 + $0x38] sm:$0xf]
        %s1218 = scalar_lea.vmem [#allocation5], 12
        %v1219 = vld [vmem:[%s1218] sm:$0x3]
        %v1228 = vunpack.c.l.b16 %v1210
        %v1229 = vunpack.c.l.b16 %v1211
        %v1230 = vunpack.c.l.b16 %v1212
        %v1231 = vunpack.c.l.b16 %v1213
        %v1232 = vunpack.c.l.b16 %v1214
        %v1233 = vunpack.c.l.b16 %v1215
        %v1234 = vunpack.c.l.b16 %v1216
        %v1235 = vunpack.c.l.b16 %v1217
        %v1236 = vpack.c.b16 %v1229, %v1228
        %v1237 = vpack.c.b16 %v1231, %v1230
        %v1238 = vpack.c.b16 %v1233, %v1232
        %v1239 = vpack.c.b16 %v1235, %v1234
        %v1241 = vsel %vm326, %v1236, 0
        %v1244 = vsel %vm326, %v1237, 0
        %v1247 = vsel %vm326, %v1238, 0
        %v1250 = vsel %vm326, %v1239, 0
        %v1253 = vsel %vm339, %v1219, 0
        %1255 = vmatprep.subr.bf16.mxu0 0
        %1256 = vmatpush1.bf16.msra.mxu0 %v1253
        %1257 = vmatprep.subr.bf16.mxu0 0
        %1258 = vmatpush1.bf16.msra.mxu0 0
        %1259 = vmatprep.subr.bf16.mxu0 0
        %1260 = vmatpush1.bf16.msra.mxu0 0
        %1261 = vmatprep.subr.bf16.mxu0 0
        %1262 = vmatpush1.bf16.msra.mxu0 0
        %1263 = vmatprep.subr.bf16.mxu0 0
        %1264 = vmatpush1.bf16.msra.mxu0 0
        %1265 = vmatprep.subr.bf16.mxu0 0
        %1266 = vmatpush1.bf16.msra.mxu0 0
        %1267 = vmatprep.subr.bf16.mxu0 0
        %1268 = vmatpush1.bf16.msra.mxu0 0
        %1269 = vmatprep.subr.bf16.mxu0 0
        %1270 = vmatpush1.bf16.msra.mxu0 0
        %1271 = vmatprep.subr.bf16.mxu0 0
        %1272 = vmatpush1.bf16.msra.mxu0 0
        %1273 = vmatprep.subr.bf16.mxu0 0
        %1274 = vmatpush1.bf16.msra.mxu0 0
        %1275 = vmatprep.subr.bf16.mxu0 0
        %1276 = vmatpush1.bf16.msra.mxu0 0
        %1277 = vmatprep.subr.bf16.mxu0 0
        %1278 = vmatpush1.bf16.msra.mxu0 0
        %1279 = vmatprep.subr.bf16.mxu0 0
        %1280 = vmatpush1.bf16.msra.mxu0 0
        %1281 = vmatprep.subr.bf16.mxu0 0
        %1282 = vmatpush1.bf16.msra.mxu0 0
        %1283 = vmatprep.subr.bf16.mxu0 0
        %1284 = vmatpush1.bf16.msra.mxu0 0
        %1285 = vmatprep.subr.bf16.mxu0 0
        %1286 = vmatpush1.bf16.msra.mxu0 0
        %1287 = vmatprep.mubr.bf16.mxu0 0
        %1288 = vmatmul.mubr.bf16.gmra.mrb[0].mxu0 %v1241
        %v1289 = vpop.f32.mrb[0].mxu0
        %v1290 = vadd.f32 0.0, %v1289
        %v1291 = vpop.f32.mrb[0].mxu0
        %v1292 = vpop.f32.mrb[0].mxu0
        %v1293 = vadd.f32 0.0, %v1292
        %v1294 = vpop.f32.mrb[0].mxu0
        %1295 = vmatprep.mubr.bf16.mxu0 0
        %1296 = vmatmul.mubr.bf16.gmra.mrb[0].mxu0 %v1244
        %v1297 = vpop.f32.mrb[0].mxu0
        %v1298 = vadd.f32 0.0, %v1297
        %v1299 = vpop.f32.mrb[0].mxu0
        %v1300 = vpop.f32.mrb[0].mxu0
        %v1301 = vadd.f32 0.0, %v1300
        %v1302 = vpop.f32.mrb[0].mxu0
        %1303 = vmatprep.mubr.bf16.mxu0 0
        %1304 = vmatmul.mubr.bf16.gmra.mrb[0].mxu0 %v1247
        %v1305 = vpop.f32.mrb[0].mxu0
        %v1306 = vadd.f32 0.0, %v1305
        %v1307 = vpop.f32.mrb[0].mxu0
        %v1308 = vpop.f32.mrb[0].mxu0
        %v1309 = vadd.f32 0.0, %v1308
        %v1310 = vpop.f32.mrb[0].mxu0
        %1311 = vmatprep.mubr.bf16.mxu0 0
        %1312 = vmatmul.mubr.bf16.gmra.mrb[0].mxu0 %v1250
        %v1313 = vpop.f32.mrb[0].mxu0
        %v1314 = vadd.f32 0.0, %v1313
        %v1315 = vpop.f32.mrb[0].mxu0
        %v1316 = vpop.f32.mrb[0].mxu0
        %v1317 = vadd.f32 0.0, %v1316
        %v1318 = vpop.f32.mrb[0].mxu0
        %1319 = vdwg.mxu0
        %v1320 = vadd.f32 %v1201, %v1290
        %v1321 = vadd.f32 %v1202, %v1293
        %v1322 = vadd.f32 %v1203, %v1298
        %v1323 = vadd.f32 %v1204, %v1301
        %v1324 = vadd.f32 %v1205, %v1306
        %v1325 = vadd.f32 %v1206, %v1309
        %v1326 = vadd.f32 %v1207, %v1314
        %v1327 = vadd.f32 %v1208, %v1317
        %s1328 = scalar_lea.vmem %s241, 80 [#allocation2]
        %v1329 = vld [vmem:[%s1328] sm:$0xf]
        %v1330 = vld [vmem:[%s1328 + $0x8] sm:$0xf]
        %v1331 = vld [vmem:[%s1328 + $0x10] sm:$0xf]
        %v1332 = vld [vmem:[%s1328 + $0x18] sm:$0xf]
        %v1333 = vld [vmem:[%s1328 + $0x20] sm:$0xf]
        %v1334 = vld [vmem:[%s1328 + $0x28] sm:$0xf]
        %v1335 = vld [vmem:[%s1328 + $0x30] sm:$0xf]
        %v1336 = vld [vmem:[%s1328 + $0x38] sm:$0xf]
        %s1337 = scalar_lea.vmem [#allocation5], 14
        %v1338 = vld [vmem:[%s1337] sm:$0x3]
        %v1347 = vunpack.c.l.b16 %v1329
        %v1348 = vunpack.c.l.b16 %v1330
        %v1349 = vunpack.c.l.b16 %v1331
        %v1350 = vunpack.c.l.b16 %v1332
        %v1351 = vunpack.c.l.b16 %v1333
        %v1352 = vunpack.c.l.b16 %v1334
        %v1353 = vunpack.c.l.b16 %v1335
        %v1354 = vunpack.c.l.b16 %v1336
        %v1355 = vpack.c.b16 %v1348, %v1347
        %v1356 = vpack.c.b16 %v1350, %v1349
        %v1357 = vpack.c.b16 %v1352, %v1351
        %v1358 = vpack.c.b16 %v1354, %v1353
        %v1360 = vsel %vm326, %v1355, 0
        %v1363 = vsel %vm326, %v1356, 0
        %v1366 = vsel %vm326, %v1357, 0
        %v1369 = vsel %vm326, %v1358, 0
        %v1372 = vsel %vm339, %v1338, 0
        %1374 = vmatprep.subr.bf16.mxu0 0
        %1375 = vmatpush1.bf16.msra.mxu0 %v1372
        %1376 = vmatprep.subr.bf16.mxu0 0
        %1377 = vmatpush1.bf16.msra.mxu0 0
        %1378 = vmatprep.subr.bf16.mxu0 0
        %1379 = vmatpush1.bf16.msra.mxu0 0
        %1380 = vmatprep.subr.bf16.mxu0 0
        %1381 = vmatpush1.bf16.msra.mxu0 0
        %1382 = vmatprep.subr.bf16.mxu0 0
        %1383 = vmatpush1.bf16.msra.mxu0 0
        %1384 = vmatprep.subr.bf16.mxu0 0
        %1385 = vmatpush1.bf16.msra.mxu0 0
        %1386 = vmatprep.subr.bf16.mxu0 0
        %1387 = vmatpush1.bf16.msra.mxu0 0
        %1388 = vmatprep.subr.bf16.mxu0 0
        %1389 = vmatpush1.bf16.msra.mxu0 0
        %1390 = vmatprep.subr.bf16.mxu0 0
        %1391 = vmatpush1.bf16.msra.mxu0 0
        %1392 = vmatprep.subr.bf16.mxu0 0
        %1393 = vmatpush1.bf16.msra.mxu0 0
        %1394 = vmatprep.subr.bf16.mxu0 0
        %1395 = vmatpush1.bf16.msra.mxu0 0
        %1396 = vmatprep.subr.bf16.mxu0 0
        %1397 = vmatpush1.bf16.msra.mxu0 0
        %1398 = vmatprep.subr.bf16.mxu0 0
        %1399 = vmatpush1.bf16.msra.mxu0 0
        %1400 = vmatprep.subr.bf16.mxu0 0
        %1401 = vmatpush1.bf16.msra.mxu0 0
        %1402 = vmatprep.subr.bf16.mxu0 0
        %1403 = vmatpush1.bf16.msra.mxu0 0
        %1404 = vmatprep.subr.bf16.mxu0 0
        %1405 = vmatpush1.bf16.msra.mxu0 0
        %1406 = vmatprep.mubr.bf16.mxu0 0
        %1407 = vmatmul.mubr.bf16.gmra.mrb[0].mxu0 %v1360
        %v1408 = vpop.f32.mrb[0].mxu0
        %v1409 = vadd.f32 0.0, %v1408
        %v1410 = vpop.f32.mrb[0].mxu0
        %v1411 = vpop.f32.mrb[0].mxu0
        %v1412 = vadd.f32 0.0, %v1411
        %v1413 = vpop.f32.mrb[0].mxu0
        %1414 = vmatprep.mubr.bf16.mxu0 0
        %1415 = vmatmul.mubr.bf16.gmra.mrb[0].mxu0 %v1363
        %v1416 = vpop.f32.mrb[0].mxu0
        %v1417 = vadd.f32 0.0, %v1416
        %v1418 = vpop.f32.mrb[0].mxu0
        %v1419 = vpop.f32.mrb[0].mxu0
        %v1420 = vadd.f32 0.0, %v1419
        %v1421 = vpop.f32.mrb[0].mxu0
        %1422 = vmatprep.mubr.bf16.mxu0 0
        %1423 = vmatmul.mubr.bf16.gmra.mrb[0].mxu0 %v1366
        %v1424 = vpop.f32.mrb[0].mxu0
        %v1425 = vadd.f32 0.0, %v1424
        %v1426 = vpop.f32.mrb[0].mxu0
        %v1427 = vpop.f32.mrb[0].mxu0
        %v1428 = vadd.f32 0.0, %v1427
        %v1429 = vpop.f32.mrb[0].mxu0
        %1430 = vmatprep.mubr.bf16.mxu0 0
        %1431 = vmatmul.mubr.bf16.gmra.mrb[0].mxu0 %v1369
        %v1432 = vpop.f32.mrb[0].mxu0
        %v1433 = vadd.f32 0.0, %v1432
        %v1434 = vpop.f32.mrb[0].mxu0
        %v1435 = vpop.f32.mrb[0].mxu0
        %v1436 = vadd.f32 0.0, %v1435
        %v1437 = vpop.f32.mrb[0].mxu0
        %1438 = vdwg.mxu0
        %v1439 = vadd.f32 %v1320, %v1409
        %v1440 = vadd.f32 %v1321, %v1412
        %v1441 = vadd.f32 %v1322, %v1417
        %v1442 = vadd.f32 %v1323, %v1420
        %v1443 = vadd.f32 %v1324, %v1425
        %v1444 = vadd.f32 %v1325, %v1428
        %v1445 = vadd.f32 %v1326, %v1433
        %v1446 = vadd.f32 %v1327, %v1436
        %v1447 = vld [vmem:[%s1209] sm:$0xf]
        %v1448 = vld [vmem:[%s1209 + $0x4] sm:$0x1]
        %v1449 = vld [vmem:[%s1209 + $0x8] sm:$0xf]
        %v1450 = vld [vmem:[%s1209 + $0xc] sm:$0x1]
        %v1451 = vld [vmem:[%s1209 + $0x10] sm:$0xf]
        %v1452 = vld [vmem:[%s1209 + $0x14] sm:$0x1]
        %v1453 = vld [vmem:[%s1209 + $0x18] sm:$0xf]
        %v1454 = vld [vmem:[%s1209 + $0x1c] sm:$0x1]
        %v1455 = vld [vmem:[%s1209 + $0x20] sm:$0xf]
        %v1456 = vld [vmem:[%s1209 + $0x24] sm:$0x1]
        %v1457 = vld [vmem:[%s1209 + $0x28] sm:$0xf]
        %v1458 = vld [vmem:[%s1209 + $0x2c] sm:$0x1]
        %v1459 = vld [vmem:[%s1209 + $0x30] sm:$0xf]
        %v1460 = vld [vmem:[%s1209 + $0x34] sm:$0x1]
        %v1461 = vld [vmem:[%s1209 + $0x38] sm:$0xf]
        %v1462 = vld [vmem:[%s1209 + $0x3c] sm:$0x1]
        %v1464 = vshrl.u32 %v1447, 16
        %v1466 = vrot.slane %v1464, 4
        %v1467 = vshll.u32 %v1447, 16
        %v1469 = vrot.slane %v1467, 5
        %v1470 = vor.u32 %v1466, %v1469
        %v1471 = vrot.slane %v1470, 4
        %v1473 = vshll.u32 %v1448, 16
        %v1475 = vrot.slane %v1473, 5
        %v1476 = vsel %vm526, %v1471, %v1475
        %v1478 = vshrl.u32 %v1449, 16
        %v1480 = vrot.slane %v1478, 4
        %v1481 = vshll.u32 %v1449, 16
        %v1483 = vrot.slane %v1481, 5
        %v1484 = vor.u32 %v1480, %v1483
        %v1485 = vrot.slane %v1484, 4
        %v1487 = vshll.u32 %v1450, 16
        %v1489 = vrot.slane %v1487, 5
        %v1490 = vsel %vm526, %v1485, %v1489
        %v1492 = vshrl.u32 %v1451, 16
        %v1494 = vrot.slane %v1492, 4
        %v1495 = vshll.u32 %v1451, 16
        %v1497 = vrot.slane %v1495, 5
        %v1498 = vor.u32 %v1494, %v1497
        %v1499 = vrot.slane %v1498, 4
        %v1501 = vshll.u32 %v1452, 16
        %v1503 = vrot.slane %v1501, 5
        %v1504 = vsel %vm526, %v1499, %v1503
        %v1506 = vshrl.u32 %v1453, 16
        %v1508 = vrot.slane %v1506, 4
        %v1509 = vshll.u32 %v1453, 16
        %v1511 = vrot.slane %v1509, 5
        %v1512 = vor.u32 %v1508, %v1511
        %v1513 = vrot.slane %v1512, 4
        %v1515 = vshll.u32 %v1454, 16
        %v1517 = vrot.slane %v1515, 5
        %v1518 = vsel %vm526, %v1513, %v1517
        %v1520 = vshrl.u32 %v1455, 16
        %v1522 = vrot.slane %v1520, 4
        %v1523 = vshll.u32 %v1455, 16
        %v1525 = vrot.slane %v1523, 5
        %v1526 = vor.u32 %v1522, %v1525
        %v1527 = vrot.slane %v1526, 4
        %v1529 = vshll.u32 %v1456, 16
        %v1531 = vrot.slane %v1529, 5
        %v1532 = vsel %vm526, %v1527, %v1531
        %v1534 = vshrl.u32 %v1457, 16
        %v1536 = vrot.slane %v1534, 4
        %v1537 = vshll.u32 %v1457, 16
        %v1539 = vrot.slane %v1537, 5
        %v1540 = vor.u32 %v1536, %v1539
        %v1541 = vrot.slane %v1540, 4
        %v1543 = vshll.u32 %v1458, 16
        %v1545 = vrot.slane %v1543, 5
        %v1546 = vsel %vm526, %v1541, %v1545
        %v1548 = vshrl.u32 %v1459, 16
        %v1550 = vrot.slane %v1548, 4
        %v1551 = vshll.u32 %v1459, 16
        %v1553 = vrot.slane %v1551, 5
        %v1554 = vor.u32 %v1550, %v1553
        %v1555 = vrot.slane %v1554, 4
        %v1557 = vshll.u32 %v1460, 16
        %v1559 = vrot.slane %v1557, 5
        %v1560 = vsel %vm526, %v1555, %v1559
        %v1562 = vshrl.u32 %v1461, 16
        %v1564 = vrot.slane %v1562, 4
        %v1565 = vshll.u32 %v1461, 16
        %v1567 = vrot.slane %v1565, 5
        %v1568 = vor.u32 %v1564, %v1567
        %v1569 = vrot.slane %v1568, 4
        %v1571 = vshll.u32 %v1462, 16
        %v1573 = vrot.slane %v1571, 5
        %v1574 = vsel %vm526, %v1569, %v1573
        %s1575 = scalar_lea.vmem [#allocation5], 16
        %v1576 = vld [vmem:[%s1575] sm:$0x3]
        %v1577 = vunpack.c.l.b16 %v1476
        %v1578 = vunpack.c.l.b16 %v1490
        %v1579 = vunpack.c.l.b16 %v1504
        %v1580 = vunpack.c.l.b16 %v1518
        %v1581 = vunpack.c.l.b16 %v1532
        %v1582 = vunpack.c.l.b16 %v1546
        %v1583 = vunpack.c.l.b16 %v1560
        %v1584 = vunpack.c.l.b16 %v1574
        %v1585 = vpack.c.b16 %v1578, %v1577
        %v1586 = vpack.c.b16 %v1580, %v1579
        %v1587 = vpack.c.b16 %v1582, %v1581
        %v1588 = vpack.c.b16 %v1584, %v1583
        %v1590 = vsel %vm326, %v1585, 0
        %v1593 = vsel %vm326, %v1586, 0
        %v1596 = vsel %vm326, %v1587, 0
        %v1599 = vsel %vm326, %v1588, 0
        %v1602 = vsel %vm339, %v1576, 0
        %1604 = vmatprep.subr.bf16.mxu0 0
        %1605 = vmatpush1.bf16.msra.mxu0 %v1602
        %1606 = vmatprep.subr.bf16.mxu0 0
        %1607 = vmatpush1.bf16.msra.mxu0 0
        %1608 = vmatprep.subr.bf16.mxu0 0
        %1609 = vmatpush1.bf16.msra.mxu0 0
        %1610 = vmatprep.subr.bf16.mxu0 0
        %1611 = vmatpush1.bf16.msra.mxu0 0
        %1612 = vmatprep.subr.bf16.mxu0 0
        %1613 = vmatpush1.bf16.msra.mxu0 0
        %1614 = vmatprep.subr.bf16.mxu0 0
        %1615 = vmatpush1.bf16.msra.mxu0 0
        %1616 = vmatprep.subr.bf16.mxu0 0
        %1617 = vmatpush1.bf16.msra.mxu0 0
        %1618 = vmatprep.subr.bf16.mxu0 0
        %1619 = vmatpush1.bf16.msra.mxu0 0
        %1620 = vmatprep.subr.bf16.mxu0 0
        %1621 = vmatpush1.bf16.msra.mxu0 0
        %1622 = vmatprep.subr.bf16.mxu0 0
        %1623 = vmatpush1.bf16.msra.mxu0 0
        %1624 = vmatprep.subr.bf16.mxu0 0
        %1625 = vmatpush1.bf16.msra.mxu0 0
        %1626 = vmatprep.subr.bf16.mxu0 0
        %1627 = vmatpush1.bf16.msra.mxu0 0
        %1628 = vmatprep.subr.bf16.mxu0 0
        %1629 = vmatpush1.bf16.msra.mxu0 0
        %1630 = vmatprep.subr.bf16.mxu0 0
        %1631 = vmatpush1.bf16.msra.mxu0 0
        %1632 = vmatprep.subr.bf16.mxu0 0
        %1633 = vmatpush1.bf16.msra.mxu0 0
        %1634 = vmatprep.subr.bf16.mxu0 0
        %1635 = vmatpush1.bf16.msra.mxu0 0
        %1636 = vmatprep.mubr.bf16.mxu0 0
        %1637 = vmatmul.mubr.bf16.gmra.mrb[0].mxu0 %v1590
        %v1638 = vpop.f32.mrb[0].mxu0
        %v1639 = vadd.f32 0.0, %v1638
        %v1640 = vpop.f32.mrb[0].mxu0
        %v1641 = vpop.f32.mrb[0].mxu0
        %v1642 = vadd.f32 0.0, %v1641
        %v1643 = vpop.f32.mrb[0].mxu0
        %1644 = vmatprep.mubr.bf16.mxu0 0
        %1645 = vmatmul.mubr.bf16.gmra.mrb[0].mxu0 %v1593
        %v1646 = vpop.f32.mrb[0].mxu0
        %v1647 = vadd.f32 0.0, %v1646
        %v1648 = vpop.f32.mrb[0].mxu0
        %v1649 = vpop.f32.mrb[0].mxu0
        %v1650 = vadd.f32 0.0, %v1649
        %v1651 = vpop.f32.mrb[0].mxu0
        %1652 = vmatprep.mubr.bf16.mxu0 0
        %1653 = vmatmul.mubr.bf16.gmra.mrb[0].mxu0 %v1596
        %v1654 = vpop.f32.mrb[0].mxu0
        %v1655 = vadd.f32 0.0, %v1654
        %v1656 = vpop.f32.mrb[0].mxu0
        %v1657 = vpop.f32.mrb[0].mxu0
        %v1658 = vadd.f32 0.0, %v1657
        %v1659 = vpop.f32.mrb[0].mxu0
        %1660 = vmatprep.mubr.bf16.mxu0 0
        %1661 = vmatmul.mubr.bf16.gmra.mrb[0].mxu0 %v1599
        %v1662 = vpop.f32.mrb[0].mxu0
        %v1663 = vadd.f32 0.0, %v1662
        %v1664 = vpop.f32.mrb[0].mxu0
        %v1665 = vpop.f32.mrb[0].mxu0
        %v1666 = vadd.f32 0.0, %v1665
        %v1667 = vpop.f32.mrb[0].mxu0
        %1668 = vdwg.mxu0
        %v1669 = vadd.f32 %v1439, %v1639
        %v1670 = vadd.f32 %v1440, %v1642
        %v1671 = vadd.f32 %v1441, %v1647
        %v1672 = vadd.f32 %v1442, %v1650
        %v1673 = vadd.f32 %v1443, %v1655
        %v1674 = vadd.f32 %v1444, %v1658
        %v1675 = vadd.f32 %v1445, %v1663
        %v1676 = vadd.f32 %v1446, %v1666
        %v1677 = vadd.f32 %v1669, %v1670
        %v1678 = vadd.f32 %v1677, %v1671
        %v1679 = vadd.f32 %v1678, %v1672
        %v1680 = vadd.f32 %v1679, %v1673
        %v1681 = vadd.f32 %v1680, %v1674
        %v1682 = vadd.f32 %v1681, %v1675
        %v1683 = vadd.f32 %v1682, %v1676
        %v1684 = vrot.slane %v1683, 4
        %v1685 = vadd.f32 %v1683, %v1684
        %v1686 = vrot.slane %v1685, 2
        %v1687 = vadd.f32 %v1685, %v1686
        %v1688 = vrot.slane %v1687, 1
        %v1689 = vadd.f32 %v1687, %v1688
        %v1690 = vrcp.pop 64.0
        %v1691 = vmul.f32 %v1689, %v1690
        %v1692 = vsub.f32 %v1669, %v1691
        %v1693 = vsub.f32 %v1670, %v1691
        %v1694 = vsub.f32 %v1671, %v1691
        %v1695 = vsub.f32 %v1672, %v1691
        %v1696 = vsub.f32 %v1673, %v1691
        %v1697 = vsub.f32 %v1674, %v1691
        %v1698 = vsub.f32 %v1675, %v1691
        %v1699 = vsub.f32 %v1676, %v1691
        %v1700 = vadd.f32 %v1692, %v1693
        %v1701 = vadd.f32 %v1700, %v1694
        %v1702 = vadd.f32 %v1701, %v1695
        %v1703 = vadd.f32 %v1702, %v1696
        %v1704 = vadd.f32 %v1703, %v1697
        %v1705 = vadd.f32 %v1704, %v1698
        %v1706 = vadd.f32 %v1705, %v1699
        %v1707 = vrot.slane %v1706, 4
        %v1708 = vadd.f32 %v1706, %v1707
        %v1709 = vrot.slane %v1708, 2
        %v1710 = vadd.f32 %v1708, %v1709
        %v1711 = vrot.slane %v1710, 1
        %v1712 = vadd.f32 %v1710, %v1711
        %v1713 = vadd.f32 %v1712, 0.0
        %v1714 = vmul.f32 %v1692, %v1692
        %v1715 = vmul.f32 %v1693, %v1693
        %v1716 = vmul.f32 %v1694, %v1694
        %v1717 = vmul.f32 %v1695, %v1695
        %v1718 = vmul.f32 %v1696, %v1696
        %v1719 = vmul.f32 %v1697, %v1697
        %v1720 = vmul.f32 %v1698, %v1698
        %v1721 = vmul.f32 %v1699, %v1699
        %v1722 = vadd.f32 %v1714, %v1715
        %v1723 = vadd.f32 %v1722, %v1716
        %v1724 = vadd.f32 %v1723, %v1717
        %v1725 = vadd.f32 %v1724, %v1718
        %v1726 = vadd.f32 %v1725, %v1719
        %v1727 = vadd.f32 %v1726, %v1720
        %v1728 = vadd.f32 %v1727, %v1721
        %v1729 = vrot.slane %v1728, 4
        %v1730 = vadd.f32 %v1728, %v1729
        %v1731 = vrot.slane %v1730, 2
        %v1732 = vadd.f32 %v1730, %v1731
        %v1733 = vrot.slane %v1732, 1
        %v1734 = vadd.f32 %v1732, %v1733
        %v1735 = vadd.f32 %v1734, 0.0
        %v1736 = vpack.c.bf16 %v1670, %v1669
        %v1737 = vpack.c.bf16 %v1672, %v1671
        %v1738 = vpack.c.bf16 %v1674, %v1673
        %v1739 = vpack.c.bf16 %v1676, %v1675
        %v1744 = vunpack.c.l.b16 %v1736
        %v1745 = vunpack.c.h.b16 %v1736
        %v1746 = vunpack.c.l.b16 %v1737
        %v1747 = vunpack.c.h.b16 %v1737
        %v1748 = vunpack.c.l.b16 %v1738
        %v1749 = vunpack.c.h.b16 %v1738
        %v1750 = vunpack.c.l.b16 %v1739
        %v1751 = vunpack.c.h.b16 %v1739
        %v1752 = vpack.c.b16 %v1744, %v1744
        %v1753 = vpack.c.b16 %v1745, %v1745
        %v1754 = vpack.c.b16 %v1746, %v1746
        %v1755 = vpack.c.b16 %v1747, %v1747
        %v1756 = vpack.c.b16 %v1748, %v1748
        %v1757 = vpack.c.b16 %v1749, %v1749
        %v1758 = vpack.c.b16 %v1750, %v1750
        %v1759 = vpack.c.b16 %v1751, %v1751
        %1768 = vst [vmem:[%s265] sm:$0xf] %v1752
        %1769 = vst [vmem:[%s265 + $0x4] sm:$0xf] %v1753
        %1770 = vst [vmem:[%s265 + $0x8] sm:$0xf] %v1754
        %1771 = vst [vmem:[%s265 + $0xc] sm:$0xf] %v1755
        %1772 = vst [vmem:[%s265 + $0x10] sm:$0xf] %v1756
        %1773 = vst [vmem:[%s265 + $0x14] sm:$0xf] %v1757
        %1774 = vst [vmem:[%s265 + $0x18] sm:$0xf] %v1758
        %1775 = vst [vmem:[%s265 + $0x1c] sm:$0xf] %v1759
        %1776 = vst [vmem:[%s271] sm:$0x1] %v1713
        %1777 = vst [vmem:[%s277] sm:$0x1] %v1735
        %1778 = vst [vmem:[%s283] sm:$0x1] %v1691
        %s1779 = sand.u32 %s85, 1
        %s1780 = scalar_lea.sflag [#allocation4], %s1779
        %s1781 = sand.u32 %s85, 1
        %s1782 = smul.addr %s1781, 32
        %s1783 = scalar_lea.vmem [#allocation7], %s1782
        %s1784 = sand.u32 %s30, 1
        %s1785 = scalar_lea.sflag [#allocation9], %s1784
        %s1786 = sand.u32 %s111, 1
        %s1787 = scalar_lea.vmem [#allocation8], %s1786
        %s1788 = sand.u32 %s30, 1
        %s1789 = scalar_lea.sflag [#allocation9], %s1788
        %s1790 = sand.u32 %s137, 1
        %s1791 = scalar_lea.vmem [#allocation10], %s1790
        %s1792 = sand.u32 %s163, 1
        %s1793 = scalar_lea.sflag [#allocation12], %s1792
        %s1794 = sand.u32 %s163, 1
        %s1795 = scalar_lea.vmem [#allocation11], %s1794
        // Predicated region
        $region37: #{block_forward.2} parent=27 // pred_check
          %p1796 = pneg %p95
        $region38: #{block_forward.2} parent=27 // pred_check_branch
          %1798 = sbr.rel (%p1796) target = $region40
        $region39: #{block_forward.2} parent=27 // pred_region
          %s1800 = ssub.s32 512, 512
          %1801 = vsyncadd %s1780, %s1800
          %s1802 = smul.addr %s30, 8
          %s1803 = smul.addr %s1802, 64
          %s1804 = scalar_lea.hbm %s2, %s1803
          %s1805 = sshll.u32 %s1783, 4
          %s1806 = int_to_ptr.vmem [resolvable:$true] %s1805
          %1811 = dma.vmem_to_hbm [thread:$0]  %s1806, 512, %s1804, %s1780, 64, 64, 4
        $region40: #{block_forward.2} parent=27 // pred_fallthru
          _
        // Predicated region
        $region41: #{block_forward.2} parent=27 // pred_check
          %p1812 = pneg %p121
        $region42: #{block_forward.2} parent=27 // pred_check_branch
          %1814 = sbr.rel (%p1812) target = $region44
        $region43: #{block_forward.2} parent=27 // pred_region
          %s1816 = ssub.s32 16, 16
          %1817 = vsyncadd %s1785, %s1816
          %s1818 = smul.addr %s30, 16
          %s1819 = scalar_lea.hbm %s3, %s1818
          %s1821 = sshll.u32 %s1787, 4
          %s1822 = int_to_ptr.vmem [resolvable:$true] %s1821
          %1824 = dma.vmem_to_hbm [thread:$0]  %s1822, 16, %s1819, %s1785
        $region44: #{block_forward.2} parent=27 // pred_fallthru
          _
        // Predicated region
        $region45: #{block_forward.2} parent=27 // pred_check
          %p1825 = pneg %p147
        $region46: #{block_forward.2} parent=27 // pred_check_branch
          %1827 = sbr.rel (%p1825) target = $region48
        $region47: #{block_forward.2} parent=27 // pred_region
          %s1829 = ssub.s32 16, 16
          %1830 = vsyncadd %s1789, %s1829
          %s1831 = smul.addr %s30, 16
          %s1832 = scalar_lea.hbm %s4, %s1831
          %s1834 = sshll.u32 %s1791, 4
          %s1835 = int_to_ptr.vmem [resolvable:$true] %s1834
          %1837 = dma.vmem_to_hbm [thread:$0]  %s1835, 16, %s1832, %s1789
        $region48: #{block_forward.2} parent=27 // pred_fallthru
          _
        // Predicated region
        $region49: #{block_forward.2} parent=27 // pred_check
          %p1838 = pneg %p173
        $region50: #{block_forward.2} parent=27 // pred_check_branch
          %1840 = sbr.rel (%p1838) target = $region52
        $region51: #{block_forward.2} parent=27 // pred_region
          %s1842 = ssub.s32 16, 16
          %1843 = vsyncadd %s1793, %s1842
          %s1844 = smul.addr %s30, 16
          %s1845 = scalar_lea.hbm %s5, %s1844
          %s1847 = sshll.u32 %s1795, 4
          %s1848 = int_to_ptr.vmem [resolvable:$true] %s1847
          %1850 = dma.vmem_to_hbm [thread:$0]  %s1848, 16, %s1845, %s1793
        $region52: #{block_forward.2} parent=27 // pred_fallthru
          _
      $region28: #{block_forward.2} parent=5 // pred_fallthru
        _
      %p1851 = scmp.le.s32.totalorder 2, %s25
      // Predicated region
      $region53: #{block_forward.2} parent=5 // pred_check
        %p1852 = pneg %p1851
      $region54: #{block_forward.2} parent=5 // pred_check_branch
        %1854 = sbr.rel (%p1852) target = $region56
      $region55: #{block_forward.2} parent=5 // pred_region
        %s1855 = ssub.s32 %s25, 2
        // Predicated region
        $region57: #{block_forward.2} parent=55 // pred_check
          %p1856 = pneg %p101
        $region58: #{block_forward.2} parent=55 // pred_check_branch
          %1858 = sbr.rel (%p1856) target = $region60
        $region59: #{block_forward.2} parent=55 // pred_region
          %s1859 = sand.u32 %s86, 1
          %s1860 = scalar_lea.sflag [#allocation4], %s1859
          %s1861 = sand.u32 %s86, 1
          %s1862 = smul.addr %s1861, 32
          %s1863 = scalar_lea.vmem [#allocation7], %s1862
          %1864 = dma.done %s1860, 512
        $region60: #{block_forward.2} parent=55 // pred_fallthru
          _
        // Predicated region
        $region61: #{block_forward.2} parent=55 // pred_check
          %p1865 = pneg %p127
        $region62: #{block_forward.2} parent=55 // pred_check_branch
          %1867 = sbr.rel (%p1865) target = $region64
        $region63: #{block_forward.2} parent=55 // pred_region
          %s1868 = sand.u32 %s31, 1
          %s1869 = scalar_lea.sflag [#allocation9], %s1868
          %s1870 = sand.u32 %s112, 1
          %s1871 = scalar_lea.vmem [#allocation8], %s1870
          %1872 = dma.done %s1869, 16
        $region64: #{block_forward.2} parent=55 // pred_fallthru
          _
        // Predicated region
        $region65: #{block_forward.2} parent=55 // pred_check
          %p1873 = pneg %p153
        $region66: #{block_forward.2} parent=55 // pred_check_branch
          %1875 = sbr.rel (%p1873) target = $region68
        $region67: #{block_forward.2} parent=55 // pred_region
          %s1876 = sand.u32 %s31, 1
          %s1877 = scalar_lea.sflag [#allocation9], %s1876
          %s1878 = sand.u32 %s138, 1
          %s1879 = scalar_lea.vmem [#allocation10], %s1878
          %1880 = dma.done %s1877, 16
        $region68: #{block_forward.2} parent=55 // pred_fallthru
          _
        // Predicated region
        $region69: #{block_forward.2} parent=55 // pred_check
          %p1881 = pneg %p179
        $region70: #{block_forward.2} parent=55 // pred_check_branch
          %1883 = sbr.rel (%p1881) target = $region72
        $region71: #{block_forward.2} parent=55 // pred_region
          %s1884 = sand.u32 %s164, 1
          %s1885 = scalar_lea.sflag [#allocation12], %s1884
          %s1886 = sand.u32 %s164, 1
          %s1887 = scalar_lea.vmem [#allocation11], %s1886
          %1888 = dma.done %s1885, 16
        $region72: #{block_forward.2} parent=55 // pred_fallthru
          _
      $region56: #{block_forward.2} parent=5 // pred_fallthru
        _
    $region6: #{block_forward.2} parent=1 // loop_footer
      %s29 = sadd.s32 1, %s25
    $region7: #{block_forward.2} parent=1 // loop_footer_branch
      %24 = sbr.rel target = $region3
    $region8: #{block_forward.2} parent=1 // loop_exit
      _
    %1889 = vsyncpa [#allocation3], 1
    %s1890 = scalar_lea.sflag [#allocation3], 1
    %1891 = vsyncpa %s1890, 1
    %1892 = vsyncpa [#allocation6], 1
    %1893 = vsyncpa [#allocation4], 1
    %s1894 = scalar_lea.sflag [#allocation4], 1
    %1895 = vsyncpa %s1894, 1
    %1896 = vsyncpa [#allocation9], 1
    %s1897 = scalar_lea.sflag [#allocation9], 1
    %1898 = vsyncpa %s1897, 1
    %1899 = vsyncpa [#allocation12], 1
    %s1900 = scalar_lea.sflag [#allocation12], 1
    %1901 = vsyncpa %s1900, 1

</llo_original>
